<compile_context>
chip_gen: v7x
topology: tpu7x:2x2x1
jax: 0.10.0
libtpu: 0.0.40
codegen_flags: <defaults>
</compile_context>

<pallas_src>
import functools
import math

import jax
import jax.numpy as jnp
from jax.experimental import pallas as pl
from jax.experimental.pallas import tpu as pltpu


def _mab_apply(h2, ones, wqkv_slab, wo_slab, *, num_heads, dim, bt, n):
    """One MAB/SAB block on a (bt*n, d_in) activation slab, all in VMEM/vregs.

    wqkv_slab: (d_in+1, 3*dim) bf16 = [Wq | scale*Wk | Wv ; bq | scale*bk | bv]
    wo_slab:   (dim+1, dim)    bf16 = [Wo ; bo]
    """
    dh = dim // num_heads
    rows = bt * n
    bf16 = jnp.bfloat16

    # Fused Q/K/V projection over the flattened row dim; bias folded in via the
    # hoisted ones column -> single bf16 MXU pass of lane width 3*dim.
    x_aug = jnp.concatenate([h2, ones], axis=-1).astype(bf16)        # (rows, d_in+1)
    qkv = jnp.dot(x_aug, wqkv_slab, preferred_element_type=jnp.float32)
    q2 = qkv[:, 0 * dim:1 * dim]     # unscaled (scale lives in the K columns)
    k2 = qkv[:, 1 * dim:2 * dim]
    v2 = qkv[:, 2 * dim:3 * dim]

    # Head-major batched layout (mirrors torch.cat(X.chunk(H, -1), 0)); the
    # concatenation is along the untiled leading axis, everything stays in regs.
    q3 = q2.reshape(bt, n, dim)
    k3 = k2.reshape(bt, n, dim)
    v3 = v2.reshape(bt, n, dim)
    qh = jnp.concatenate(
        [q3[:, :, h * dh:(h + 1) * dh] for h in range(num_heads)], axis=0)
    kh = jnp.concatenate(
        [k3[:, :, h * dh:(h + 1) * dh] for h in range(num_heads)], axis=0)
    vh = jnp.concatenate(
        [v3[:, :, h * dh:(h + 1) * dh] for h in range(num_heads)], axis=0)

    logits = jnp.einsum("bnd,bmd->bnm", qh.astype(bf16), kh.astype(bf16),
                        preferred_element_type=jnp.float32)          # (H*bt, n, n)
    m = jnp.max(logits, axis=-1, keepdims=True)
    p = jnp.exp(logits - m)
    a = p / jnp.sum(p, axis=-1, keepdims=True)                       # exact softmax
    ctx = jnp.einsum("bnm,bmd->bnd", a.astype(bf16), vh.astype(bf16),
                     preferred_element_type=jnp.float32)             # (H*bt, n, dh)

    # Reassemble heads in registers (no VMEM scratch / masked-store round trip).
    attn = jnp.concatenate(
        [ctx[h * bt:(h + 1) * bt] for h in range(num_heads)], axis=-1)

    o1 = q2 + attn.reshape(rows, dim)                    # ln1 / dropout = Identity
    o1_aug = jnp.concatenate([o1, ones], axis=-1).astype(bf16)       # (rows, dim+1)
    ho = jnp.dot(o1_aug, wo_slab, preferred_element_type=jnp.float32)
    return o1 + jnp.maximum(ho, 0.0)                     # ln2 = Identity


def stacked_sab_kernel(x_ref, wqkv0_ref, wo0_ref, wqkv1_ref, wo1_ref, o_ref, *,
                       num_heads, num_blocks, dim, bt, n):
    d_x = x_ref.shape[-1]
    h2 = x_ref[...].reshape(bt * n, d_x)
    # One ones column, hoisted and reused by every block's bias folding.
    ones = jnp.ones((bt * n, 1), jnp.float32)

    h2 = _mab_apply(h2, ones, wqkv0_ref[...], wo0_ref[...],
                    num_heads=num_heads, dim=dim, bt=bt, n=n)

    n_shared = num_blocks - 1
    if n_shared > 0:
        # Blocks 1..num_blocks-1 share ONE parameter set (faithful to Python
        # list `*` repetition of the same SAB module).
        wqkv1 = wqkv1_ref[...]
        wo1 = wo1_ref[...]
        if n_shared <= 4:
            for _ in range(n_shared):            # small stack: full unroll
                h2 = _mab_apply(h2, ones, wqkv1, wo1,
                                num_heads=num_heads, dim=dim, bt=bt, n=n)
        else:
            # Deep stacks: bound vreg live ranges with a visible loop.
            def body(_, hh):
                return _mab_apply(hh, ones, wqkv1, wo1,
                                  num_heads=num_heads, dim=dim, bt=bt, n=n)
            h2 = jax.lax.fori_loop(0, n_shared, body, h2, unroll=2)

    o_ref[...] = h2.reshape(bt, n, dim)


def _pack_qkv_slab(p, scale):
    """[Wq | scale*Wk | Wv ; bq | scale*bk | bv] -> (d_in+1, 3*dim) bf16 slab."""
    w = jnp.concatenate([p["wq"], p["wk"] * scale, p["wv"]], axis=1)
    b = jnp.concatenate([p["bq"], p["bk"] * scale, p["bv"]], axis=1)
    return jnp.concatenate([w, b], axis=0).astype(jnp.bfloat16)


def _pack_o_slab(p):
    return jnp.concatenate([p["wo"], p["bo"]], axis=0).astype(jnp.bfloat16)


def _choose_batch_tile(B, N, target_rows):
    """Smallest divisor Bt of B with Bt*N >= target_rows, while keeping at
    least 2 grid steps when B >= 2 (so both v7x TensorCores get work)."""
    best = 1
    for bt in range(1, B + 1):
        if B % bt != 0:
            continue
        if B >= 2 and B // bt < 2:
            continue
        best = bt
        if bt * N >= target_rows:
            break
    return best


def stacked_sab_forward(x, block_params, num_blocks, num_heads,
                        batch_tile=None, target_rows=256):
    """Pallas StackedSAB forward (ln=False, p=None, residual=True, mask=None)."""
    B, N, dX = x.shape
    dim = block_params[0]["wq"].shape[1]
    assert dim % num_heads == 0, "dim must be divisible by num_heads"
    assert num_blocks >= 1
    scale = 1.0 / math.sqrt(dim)   # PyTorch scales by sqrt(Q.shape[-1]) == sqrt(dim)

    if batch_tile is None:
        # target_rows=256 matches v6e/v7x MXU granularity; use 128 on v5e.
        batch_tile = _choose_batch_tile(B, N, target_rows)
    assert B % batch_tile == 0
    grid_b = B // batch_tile

    wqkv0 = _pack_qkv_slab(block_params[0], scale)      # (dX+1, 3*dim) bf16
    wo0 = _pack_o_slab(block_params[0])                 # (dim+1, dim)  bf16
    if num_blocks > 1:
        wqkv1 = _pack_qkv_slab(block_params[1], scale)  # shared blocks 1..N-1
        wo1 = _pack_o_slab(block_params[1])
    else:  # unused by the kernel body, keeps the signature fixed
        wqkv1 = jnp.zeros((dim + 1, 3 * dim), jnp.bfloat16)
        wo1 = jnp.zeros((dim + 1, dim), jnp.bfloat16)

    kernel = functools.partial(
        stacked_sab_kernel, num_heads=num_heads, num_blocks=num_blocks,
        dim=dim, bt=batch_tile, n=N)

    const = lambda b: (0, 0)
    return pl.pallas_call(
        kernel,
        out_shape=jax.ShapeDtypeStruct((B, N, dim), jnp.float32),
        grid=(grid_b,),
        in_specs=[
            pl.BlockSpec((batch_tile, N, dX), lambda b: (b, 0, 0)),
            # Weight slabs: constant index_map -> loaded once, stay resident.
            pl.BlockSpec((dX + 1, 3 * dim), const),   # block-0 [Wqkv; b]
            pl.BlockSpec((dim + 1, dim), const),      # block-0 [Wo; bo]
            pl.BlockSpec((dim + 1, 3 * dim), const),  # shared  [Wqkv; b]
            pl.BlockSpec((dim + 1, dim), const),      # shared  [Wo; bo]
        ],
        out_specs=pl.BlockSpec((batch_tile, N, dim), lambda b: (b, 0, 0)),
        compiler_params=pltpu.CompilerParams(
            dimension_semantics=("parallel",)),
    )(x, wqkv0, wo0, wqkv1, wo1)


def init_mab_params(key, dim_in, dim):
    ks = jax.random.split(key, 8)
    s_in = 1.0 / math.sqrt(dim_in)
    s_d = 1.0 / math.sqrt(dim)
    return {
        "wq": jax.random.uniform(ks[0], (dim_in, dim), jnp.float32, -s_in, s_in),
        "bq": jax.random.uniform(ks[1], (1, dim), jnp.float32, -s_in, s_in),
        "wk": jax.random.uniform(ks[2], (dim_in, dim), jnp.float32, -s_in, s_in),
        "bk": jax.random.uniform(ks[3], (1, dim), jnp.float32, -s_in, s_in),
        "wv": jax.random.uniform(ks[4], (dim_in, dim), jnp.float32, -s_in, s_in),
        "bv": jax.random.uniform(ks[5], (1, dim), jnp.float32, -s_in, s_in),
        "wo": jax.random.uniform(ks[6], (dim, dim), jnp.float32, -s_d, s_d),
        "bo": jax.random.uniform(ks[7], (1, dim), jnp.float32, -s_d, s_d),
    }


# ----- pure-JAX references -----
# bf16_matmuls=False : PyTorch-faithful f32 reference (semantics check, loose tol
#                      because the kernel intentionally uses bf16 MXU operands).
# bf16_matmuls=True  : same math with bf16 matmul operands / f32 accumulation,
#                      matching the kernel's precision (tight tolerance check).
def mab_ref(x, p, num_heads, bf16_matmuls=False):
    dim = p["wq"].shape[1]
    dh = dim // num_heads
    scale = 1.0 / math.sqrt(dim)
    cast = (lambda a: a.astype(jnp.bfloat16)) if bf16_matmuls else (lambda a: a)
    bias = (lambda b: cast(b).astype(jnp.float32)) if bf16_matmuls else (lambda b: b)

    q = jnp.einsum("bnk,kd->bnd", cast(x), cast(p["wq"]),
                   preferred_element_type=jnp.float32) + bias(p["bq"])
    k = jnp.einsum("bnk,kd->bnd", cast(x), cast(p["wk"] * scale),
                   preferred_element_type=jnp.float32) + bias(p["bk"] * scale)
    v = jnp.einsum("bnk,kd->bnd", cast(x), cast(p["wv"]),
                   preferred_element_type=jnp.float32) + bias(p["bv"])
    outs = []
    for h in range(num_heads):
        qh, kh, vh = (t[..., h * dh:(h + 1) * dh] for t in (q, k, v))
        logits = jnp.einsum("bnd,bmd->bnm", cast(qh), cast(kh),
                            preferred_element_type=jnp.float32)
        a = jax.nn.softmax(logits, axis=-1)
        outs.append(jnp.einsum("bnm,bmd->bnd", cast(a), cast(vh),
                               preferred_element_type=jnp.float32))
    attn = jnp.concatenate(outs, axis=-1)
    o1 = q + attn
    ho = jnp.einsum("bnd,de->bne", cast(o1), cast(p["wo"]),
                    preferred_element_type=jnp.float32) + bias(p["bo"])
    return o1 + jax.nn.relu(ho)


def stacked_sab_ref(x, block_params, num_blocks, num_heads, bf16_matmuls=False):
    h = mab_ref(x, block_params[0], num_heads, bf16_matmuls)
    for _ in range(num_blocks - 1):
        h = mab_ref(h, block_params[1], num_heads, bf16_matmuls)
    return h


if __name__ == "__main__":
    B, N = 2, 8          # batch, set size (seq)
    dim_X, dim = 4, 32   # input feature dim, hidden dim
    num_heads = 4
    num_blocks = 2

    key = jax.random.PRNGKey(0)
    kx, k0, k1 = jax.random.split(key, 3)
    x = jax.random.normal(kx, (B, N, dim_X), jnp.float32)

    params_first = init_mab_params(k0, dim_X, dim)
    params_shared = init_mab_params(k1, dim, dim)
    block_params = (params_first, params_shared)

    out = stacked_sab_forward(x, block_params, num_blocks, num_heads)
    out = jax.block_until_ready(out)
    assert out.shape == (B, N, dim)

    # Tight check vs. a precision-matched (bf16-matmul) reference.
    ref_bf16 = stacked_sab_ref(x, block_params, num_blocks, num_heads,
                               bf16_matmuls=True)
    assert jnp.allclose(out, ref_bf16, atol=1e-2, rtol=1e-2), (
        float(jnp.max(jnp.abs(out - ref_bf16))))

    # Loose check vs. the PyTorch-faithful f32 reference (tolerance budget for
    # the intentional bf16 MXU operands).
    ref_f32 = stacked_sab_ref(x, block_params, num_blocks, num_heads,
                              bf16_matmuls=False)
    assert jnp.allclose(out, ref_f32, atol=1e-1, rtol=1e-1), (
        float(jnp.max(jnp.abs(out - ref_f32))))

    print("KERNEL_OK")
</pallas_src>

<mosaic_0001>
module attributes {stable_mosaic.version = 11 : i64} {
  func.func @stacked_sab_kernel(%arg0: i32, %arg1: memref<1x8x4xf32, #tpu.memory_space<vmem>>, %arg2: memref<5x96xbf16, #tpu.memory_space<vmem>>, %arg3: memref<33x32xbf16, #tpu.memory_space<vmem>>, %arg4: memref<33x96xbf16, #tpu.memory_space<vmem>>, %arg5: memref<33x32xbf16, #tpu.memory_space<vmem>>, %arg6: memref<1x8x32xf32, #tpu.memory_space<vmem>>) attributes {dimension_semantics = [#tpu.dimension_semantics<parallel>], iteration_bounds = array<i64: 2>, scalar_prefetch = 0 : i64, scratch_operands = 0 : i64, tpu.core_type = #tpu.core_type<tc>, window_params = [{transform_indices = @transform_0, window_bounds = array<i64: 1, 8, 4>}, {pipeline_mode = #tpu.pipeline_mode<synchronous>, transform_indices = @transform_1, window_bounds = array<i64: 5, 96>}, {pipeline_mode = #tpu.pipeline_mode<synchronous>, transform_indices = @transform_2, window_bounds = array<i64: 33, 32>}, {pipeline_mode = #tpu.pipeline_mode<synchronous>, transform_indices = @transform_3, window_bounds = array<i64: 33, 96>}, {pipeline_mode = #tpu.pipeline_mode<synchronous>, transform_indices = @transform_4, window_bounds = array<i64: 33, 32>}, {transform_indices = @transform_5, window_bounds = array<i64: 1, 8, 32>}]} {
    %c0 = arith.constant 0 : index
    %c0_0 = arith.constant 0 : index
    %c0_1 = arith.constant 0 : index
    %0 = vector.load %arg1[%c0, %c0_0, %c0_1] : memref<1x8x4xf32, #tpu.memory_space<vmem>>, vector<1x8x4xf32>
    %1 = vector.shape_cast %0 : vector<1x8x4xf32> to vector<8x4xf32>
    %cst = arith.constant 1.000000e+00 : f32
    %2 = vector.broadcast %cst : f32 to vector<8x1xf32>
    %c0_2 = arith.constant 0 : index
    %c0_3 = arith.constant 0 : index
    %3 = vector.load %arg2[%c0_2, %c0_3] : memref<5x96xbf16, #tpu.memory_space<vmem>>, vector<5x96xbf16>
    %c0_4 = arith.constant 0 : index
    %c0_5 = arith.constant 0 : index
    %4 = vector.load %arg3[%c0_4, %c0_5] : memref<33x32xbf16, #tpu.memory_space<vmem>>, vector<33x32xbf16>
    %5 = tpu.concatenate %1, %2 in 1 : vector<8x4xf32>, vector<8x1xf32> -> vector<8x5xf32>
    %6 = arith.truncf %5 : vector<8x5xf32> to vector<8x5xbf16>
    %cst_6 = arith.constant dense<0.000000e+00> : vector<8x96xf32>
    %7 = tpu.matmul %6, %3, %cst_6 {dimension_numbers = #tpu.dot_dimension_numbers<[1], [0], [0], [1], [0, 0, 1, 1], [], []>} : vector<8x5xbf16>, vector<5x96xbf16>, vector<8x96xf32> -> vector<8x96xf32>
    %8 = vector.extract_strided_slice %7 {offsets = [0, 0], sizes = [8, 32], strides = [1, 1]} : vector<8x96xf32> to vector<8x32xf32>
    %9 = vector.extract_strided_slice %7 {offsets = [0, 32], sizes = [8, 32], strides = [1, 1]} : vector<8x96xf32> to vector<8x32xf32>
    %10 = vector.extract_strided_slice %7 {offsets = [0, 64], sizes = [8, 32], strides = [1, 1]} : vector<8x96xf32> to vector<8x32xf32>
    %11 = vector.shape_cast %8 : vector<8x32xf32> to vector<1x8x32xf32>
    %12 = vector.shape_cast %9 : vector<8x32xf32> to vector<1x8x32xf32>
    %13 = vector.shape_cast %10 : vector<8x32xf32> to vector<1x8x32xf32>
    %14 = vector.extract_strided_slice %11 {offsets = [0, 0, 0], sizes = [1, 8, 8], strides = [1, 1, 1]} : vector<1x8x32xf32> to vector<1x8x8xf32>
    %15 = vector.extract_strided_slice %11 {offsets = [0, 0, 8], sizes = [1, 8, 8], strides = [1, 1, 1]} : vector<1x8x32xf32> to vector<1x8x8xf32>
    %16 = vector.extract_strided_slice %11 {offsets = [0, 0, 16], sizes = [1, 8, 8], strides = [1, 1, 1]} : vector<1x8x32xf32> to vector<1x8x8xf32>
    %17 = vector.extract_strided_slice %11 {offsets = [0, 0, 24], sizes = [1, 8, 8], strides = [1, 1, 1]} : vector<1x8x32xf32> to vector<1x8x8xf32>
    %18 = tpu.concatenate %14, %15, %16, %17 in 0 : vector<1x8x8xf32>, vector<1x8x8xf32>, vector<1x8x8xf32>, vector<1x8x8xf32> -> vector<4x8x8xf32>
    %19 = vector.extract_strided_slice %12 {offsets = [0, 0, 0], sizes = [1, 8, 8], strides = [1, 1, 1]} : vector<1x8x32xf32> to vector<1x8x8xf32>
    %20 = vector.extract_strided_slice %12 {offsets = [0, 0, 8], sizes = [1, 8, 8], strides = [1, 1, 1]} : vector<1x8x32xf32> to vector<1x8x8xf32>
    %21 = vector.extract_strided_slice %12 {offsets = [0, 0, 16], sizes = [1, 8, 8], strides = [1, 1, 1]} : vector<1x8x32xf32> to vector<1x8x8xf32>
    %22 = vector.extract_strided_slice %12 {offsets = [0, 0, 24], sizes = [1, 8, 8], strides = [1, 1, 1]} : vector<1x8x32xf32> to vector<1x8x8xf32>
    %23 = tpu.concatenate %19, %20, %21, %22 in 0 : vector<1x8x8xf32>, vector<1x8x8xf32>, vector<1x8x8xf32>, vector<1x8x8xf32> -> vector<4x8x8xf32>
    %24 = vector.extract_strided_slice %13 {offsets = [0, 0, 0], sizes = [1, 8, 8], strides = [1, 1, 1]} : vector<1x8x32xf32> to vector<1x8x8xf32>
    %25 = vector.extract_strided_slice %13 {offsets = [0, 0, 8], sizes = [1, 8, 8], strides = [1, 1, 1]} : vector<1x8x32xf32> to vector<1x8x8xf32>
    %26 = vector.extract_strided_slice %13 {offsets = [0, 0, 16], sizes = [1, 8, 8], strides = [1, 1, 1]} : vector<1x8x32xf32> to vector<1x8x8xf32>
    %27 = vector.extract_strided_slice %13 {offsets = [0, 0, 24], sizes = [1, 8, 8], strides = [1, 1, 1]} : vector<1x8x32xf32> to vector<1x8x8xf32>
    %28 = tpu.concatenate %24, %25, %26, %27 in 0 : vector<1x8x8xf32>, vector<1x8x8xf32>, vector<1x8x8xf32>, vector<1x8x8xf32> -> vector<4x8x8xf32>
    %29 = arith.truncf %18 : vector<4x8x8xf32> to vector<4x8x8xbf16>
    %30 = arith.truncf %23 : vector<4x8x8xf32> to vector<4x8x8xbf16>
    "tpu.trace_start"() <{level = 10 : i32, message = "bnd,bmd->bnm"}> : () -> ()
    %cst_7 = arith.constant dense<0.000000e+00> : vector<4x8x8xf32>
    %31 = tpu.matmul %29, %30, %cst_7 {dimension_numbers = #tpu.dot_dimension_numbers<[2], [2], [1], [1], [0, 0, 0, 1, 1, 1], [0], [0]>} : vector<4x8x8xbf16>, vector<4x8x8xbf16>, vector<4x8x8xf32> -> vector<4x8x8xf32>
    "tpu.trace_stop"() : () -> ()
    %cst_8 = arith.constant dense<0xFF800000> : vector<4x8xf32>
    %32 = vector.multi_reduction <maximumf>, %31, %cst_8 [2] : vector<4x8x8xf32> to vector<4x8xf32>
    %33 = vector.shape_cast %32 : vector<4x8xf32> to vector<4x8x1xf32>
    %34 = vector.broadcast %33 : vector<4x8x1xf32> to vector<4x8x8xf32>
    %35 = arith.subf %31, %34 : vector<4x8x8xf32>
    %36 = math.exp %35 : vector<4x8x8xf32>
    %cst_9 = arith.constant dense<0.000000e+00> : vector<4x8xf32>
    %37 = vector.multi_reduction <add>, %36, %cst_9 [2] : vector<4x8x8xf32> to vector<4x8xf32>
    %38 = vector.shape_cast %37 : vector<4x8xf32> to vector<4x8x1xf32>
    %39 = vector.broadcast %38 : vector<4x8x1xf32> to vector<4x8x8xf32>
    %40 = arith.divf %36, %39 : vector<4x8x8xf32>
    %41 = arith.truncf %40 : vector<4x8x8xf32> to vector<4x8x8xbf16>
    %42 = arith.truncf %28 : vector<4x8x8xf32> to vector<4x8x8xbf16>
    "tpu.trace_start"() <{level = 10 : i32, message = "bnm,bmd->bnd"}> : () -> ()
    %cst_10 = arith.constant dense<0.000000e+00> : vector<4x8x8xf32>
    %43 = tpu.matmul %41, %42, %cst_10 {dimension_numbers = #tpu.dot_dimension_numbers<[2], [1], [1], [2], [0, 0, 0, 1, 1, 2], [0], [0]>} : vector<4x8x8xbf16>, vector<4x8x8xbf16>, vector<4x8x8xf32> -> vector<4x8x8xf32>
    "tpu.trace_stop"() : () -> ()
    %44 = vector.extract_strided_slice %43 {offsets = [0, 0, 0], sizes = [1, 8, 8], strides = [1, 1, 1]} : vector<4x8x8xf32> to vector<1x8x8xf32>
    %45 = vector.extract_strided_slice %43 {offsets = [1, 0, 0], sizes = [1, 8, 8], strides = [1, 1, 1]} : vector<4x8x8xf32> to vector<1x8x8xf32>
    %46 = vector.extract_strided_slice %43 {offsets = [2, 0, 0], sizes = [1, 8, 8], strides = [1, 1, 1]} : vector<4x8x8xf32> to vector<1x8x8xf32>
    %47 = vector.extract_strided_slice %43 {offsets = [3, 0, 0], sizes = [1, 8, 8], strides = [1, 1, 1]} : vector<4x8x8xf32> to vector<1x8x8xf32>
    %48 = tpu.concatenate %44, %45, %46, %47 in 2 : vector<1x8x8xf32>, vector<1x8x8xf32>, vector<1x8x8xf32>, vector<1x8x8xf32> -> vector<1x8x32xf32>
    %49 = vector.shape_cast %48 : vector<1x8x32xf32> to vector<8x32xf32>
    %50 = arith.addf %8, %49 : vector<8x32xf32>
    %51 = tpu.concatenate %50, %2 in 1 : vector<8x32xf32>, vector<8x1xf32> -> vector<8x33xf32>
    %52 = arith.truncf %51 : vector<8x33xf32> to vector<8x33xbf16>
    %cst_11 = arith.constant dense<0.000000e+00> : vector<8x32xf32>
    %53 = tpu.matmul %52, %4, %cst_11 {dimension_numbers = #tpu.dot_dimension_numbers<[1], [0], [0], [1], [0, 0, 1, 1], [], []>} : vector<8x33xbf16>, vector<33x32xbf16>, vector<8x32xf32> -> vector<8x32xf32>
    %cst_12 = arith.constant 0.000000e+00 : f32
    %54 = vector.broadcast %cst_12 : f32 to vector<8x32xf32>
    %55 = arith.maximumf %53, %54 : vector<8x32xf32>
    %56 = arith.addf %50, %55 : vector<8x32xf32>
    %c0_13 = arith.constant 0 : index
    %c0_14 = arith.constant 0 : index
    %57 = vector.load %arg4[%c0_13, %c0_14] : memref<33x96xbf16, #tpu.memory_space<vmem>>, vector<33x96xbf16>
    %c0_15 = arith.constant 0 : index
    %c0_16 = arith.constant 0 : index
    %58 = vector.load %arg5[%c0_15, %c0_16] : memref<33x32xbf16, #tpu.memory_space<vmem>>, vector<33x32xbf16>
    %59 = tpu.concatenate %56, %2 in 1 : vector<8x32xf32>, vector<8x1xf32> -> vector<8x33xf32>
    %60 = arith.truncf %59 : vector<8x33xf32> to vector<8x33xbf16>
    %cst_17 = arith.constant dense<0.000000e+00> : vector<8x96xf32>
    %61 = tpu.matmul %60, %57, %cst_17 {dimension_numbers = #tpu.dot_dimension_numbers<[1], [0], [0], [1], [0, 0, 1, 1], [], []>} : vector<8x33xbf16>, vector<33x96xbf16>, vector<8x96xf32> -> vector<8x96xf32>
    %62 = vector.extract_strided_slice %61 {offsets = [0, 0], sizes = [8, 32], strides = [1, 1]} : vector<8x96xf32> to vector<8x32xf32>
    %63 = vector.extract_strided_slice %61 {offsets = [0, 32], sizes = [8, 32], strides = [1, 1]} : vector<8x96xf32> to vector<8x32xf32>
    %64 = vector.extract_strided_slice %61 {offsets = [0, 64], sizes = [8, 32], strides = [1, 1]} : vector<8x96xf32> to vector<8x32xf32>
    %65 = vector.shape_cast %62 : vector<8x32xf32> to vector<1x8x32xf32>
    %66 = vector.shape_cast %63 : vector<8x32xf32> to vector<1x8x32xf32>
    %67 = vector.shape_cast %64 : vector<8x32xf32> to vector<1x8x32xf32>
    %68 = vector.extract_strided_slice %65 {offsets = [0, 0, 0], sizes = [1, 8, 8], strides = [1, 1, 1]} : vector<1x8x32xf32> to vector<1x8x8xf32>
    %69 = vector.extract_strided_slice %65 {offsets = [0, 0, 8], sizes = [1, 8, 8], strides = [1, 1, 1]} : vector<1x8x32xf32> to vector<1x8x8xf32>
    %70 = vector.extract_strided_slice %65 {offsets = [0, 0, 16], sizes = [1, 8, 8], strides = [1, 1, 1]} : vector<1x8x32xf32> to vector<1x8x8xf32>
    %71 = vector.extract_strided_slice %65 {offsets = [0, 0, 24], sizes = [1, 8, 8], strides = [1, 1, 1]} : vector<1x8x32xf32> to vector<1x8x8xf32>
    %72 = tpu.concatenate %68, %69, %70, %71 in 0 : vector<1x8x8xf32>, vector<1x8x8xf32>, vector<1x8x8xf32>, vector<1x8x8xf32> -> vector<4x8x8xf32>
    %73 = vector.extract_strided_slice %66 {offsets = [0, 0, 0], sizes = [1, 8, 8], strides = [1, 1, 1]} : vector<1x8x32xf32> to vector<1x8x8xf32>
    %74 = vector.extract_strided_slice %66 {offsets = [0, 0, 8], sizes = [1, 8, 8], strides = [1, 1, 1]} : vector<1x8x32xf32> to vector<1x8x8xf32>
    %75 = vector.extract_strided_slice %66 {offsets = [0, 0, 16], sizes = [1, 8, 8], strides = [1, 1, 1]} : vector<1x8x32xf32> to vector<1x8x8xf32>
    %76 = vector.extract_strided_slice %66 {offsets = [0, 0, 24], sizes = [1, 8, 8], strides = [1, 1, 1]} : vector<1x8x32xf32> to vector<1x8x8xf32>
    %77 = tpu.concatenate %73, %74, %75, %76 in 0 : vector<1x8x8xf32>, vector<1x8x8xf32>, vector<1x8x8xf32>, vector<1x8x8xf32> -> vector<4x8x8xf32>
    %78 = vector.extract_strided_slice %67 {offsets = [0, 0, 0], sizes = [1, 8, 8], strides = [1, 1, 1]} : vector<1x8x32xf32> to vector<1x8x8xf32>
    %79 = vector.extract_strided_slice %67 {offsets = [0, 0, 8], sizes = [1, 8, 8], strides = [1, 1, 1]} : vector<1x8x32xf32> to vector<1x8x8xf32>
    %80 = vector.extract_strided_slice %67 {offsets = [0, 0, 16], sizes = [1, 8, 8], strides = [1, 1, 1]} : vector<1x8x32xf32> to vector<1x8x8xf32>
    %81 = vector.extract_strided_slice %67 {offsets = [0, 0, 24], sizes = [1, 8, 8], strides = [1, 1, 1]} : vector<1x8x32xf32> to vector<1x8x8xf32>
    %82 = tpu.concatenate %78, %79, %80, %81 in 0 : vector<1x8x8xf32>, vector<1x8x8xf32>, vector<1x8x8xf32>, vector<1x8x8xf32> -> vector<4x8x8xf32>
    %83 = arith.truncf %72 : vector<4x8x8xf32> to vector<4x8x8xbf16>
    %84 = arith.truncf %77 : vector<4x8x8xf32> to vector<4x8x8xbf16>
    "tpu.trace_start"() <{level = 10 : i32, message = "bnd,bmd->bnm"}> : () -> ()
    %cst_18 = arith.constant dense<0.000000e+00> : vector<4x8x8xf32>
    %85 = tpu.matmul %83, %84, %cst_18 {dimension_numbers = #tpu.dot_dimension_numbers<[2], [2], [1], [1], [0, 0, 0, 1, 1, 1], [0], [0]>} : vector<4x8x8xbf16>, vector<4x8x8xbf16>, vector<4x8x8xf32> -> vector<4x8x8xf32>
    "tpu.trace_stop"() : () -> ()
    %cst_19 = arith.constant dense<0xFF800000> : vector<4x8xf32>
    %86 = vector.multi_reduction <maximumf>, %85, %cst_19 [2] : vector<4x8x8xf32> to vector<4x8xf32>
    %87 = vector.shape_cast %86 : vector<4x8xf32> to vector<4x8x1xf32>
    %88 = vector.broadcast %87 : vector<4x8x1xf32> to vector<4x8x8xf32>
    %89 = arith.subf %85, %88 : vector<4x8x8xf32>
    %90 = math.exp %89 : vector<4x8x8xf32>
    %cst_20 = arith.constant dense<0.000000e+00> : vector<4x8xf32>
    %91 = vector.multi_reduction <add>, %90, %cst_20 [2] : vector<4x8x8xf32> to vector<4x8xf32>
    %92 = vector.shape_cast %91 : vector<4x8xf32> to vector<4x8x1xf32>
    %93 = vector.broadcast %92 : vector<4x8x1xf32> to vector<4x8x8xf32>
    %94 = arith.divf %90, %93 : vector<4x8x8xf32>
    %95 = arith.truncf %94 : vector<4x8x8xf32> to vector<4x8x8xbf16>
    %96 = arith.truncf %82 : vector<4x8x8xf32> to vector<4x8x8xbf16>
    "tpu.trace_start"() <{level = 10 : i32, message = "bnm,bmd->bnd"}> : () -> ()
    %cst_21 = arith.constant dense<0.000000e+00> : vector<4x8x8xf32>
    %97 = tpu.matmul %95, %96, %cst_21 {dimension_numbers = #tpu.dot_dimension_numbers<[2], [1], [1], [2], [0, 0, 0, 1, 1, 2], [0], [0]>} : vector<4x8x8xbf16>, vector<4x8x8xbf16>, vector<4x8x8xf32> -> vector<4x8x8xf32>
    "tpu.trace_stop"() : () -> ()
    %98 = vector.extract_strided_slice %97 {offsets = [0, 0, 0], sizes = [1, 8, 8], strides = [1, 1, 1]} : vector<4x8x8xf32> to vector<1x8x8xf32>
    %99 = vector.extract_strided_slice %97 {offsets = [1, 0, 0], sizes = [1, 8, 8], strides = [1, 1, 1]} : vector<4x8x8xf32> to vector<1x8x8xf32>
    %100 = vector.extract_strided_slice %97 {offsets = [2, 0, 0], sizes = [1, 8, 8], strides = [1, 1, 1]} : vector<4x8x8xf32> to vector<1x8x8xf32>
    %101 = vector.extract_strided_slice %97 {offsets = [3, 0, 0], sizes = [1, 8, 8], strides = [1, 1, 1]} : vector<4x8x8xf32> to vector<1x8x8xf32>
    %102 = tpu.concatenate %98, %99, %100, %101 in 2 : vector<1x8x8xf32>, vector<1x8x8xf32>, vector<1x8x8xf32>, vector<1x8x8xf32> -> vector<1x8x32xf32>
    %103 = vector.shape_cast %102 : vector<1x8x32xf32> to vector<8x32xf32>
    %104 = arith.addf %62, %103 : vector<8x32xf32>
    %105 = tpu.concatenate %104, %2 in 1 : vector<8x32xf32>, vector<8x1xf32> -> vector<8x33xf32>
    %106 = arith.truncf %105 : vector<8x33xf32> to vector<8x33xbf16>
    %cst_22 = arith.constant dense<0.000000e+00> : vector<8x32xf32>
    %107 = tpu.matmul %106, %58, %cst_22 {dimension_numbers = #tpu.dot_dimension_numbers<[1], [0], [0], [1], [0, 0, 1, 1], [], []>} : vector<8x33xbf16>, vector<33x32xbf16>, vector<8x32xf32> -> vector<8x32xf32>
    %cst_23 = arith.constant 0.000000e+00 : f32
    %108 = vector.broadcast %cst_23 : f32 to vector<8x32xf32>
    %109 = arith.maximumf %107, %108 : vector<8x32xf32>
    %110 = arith.addf %104, %109 : vector<8x32xf32>
    %111 = vector.shape_cast %110 : vector<8x32xf32> to vector<1x8x32xf32>
    %c0_24 = arith.constant 0 : index
    %c0_25 = arith.constant 0 : index
    %c0_26 = arith.constant 0 : index
    %112 = vector.load %arg6[%c0_24, %c0_25, %c0_26] : memref<1x8x32xf32, #tpu.memory_space<vmem>>, vector<1x8x32xf32>
    tpu.vector_store %arg6[%c0_24, %c0_25, %c0_26], %111 {strides = array<i32>} : memref<1x8x32xf32, #tpu.memory_space<vmem>>, vector<1x8x32xf32>,
    return
  }
  func.func @transform_0(%arg0: i32) -> (i32, i32, i32) {
    %c0_i32 = arith.constant 0 : i32
    %c0_i32_0 = arith.constant 0 : i32
    %c0_i32_1 = arith.constant 0 : i32
    return %arg0, %c0_i32, %c0_i32_0 : i32, i32, i32
  }
  func.func @transform_1(%arg0: i32) -> (i32, i32) {
    %c0_i32 = arith.constant 0 : i32
    %c0_i32_0 = arith.constant 0 : i32
    %c0_i32_1 = arith.constant 0 : i32
    return %c0_i32, %c0_i32_0 : i32, i32
  }
  func.func @transform_2(%arg0: i32) -> (i32, i32) {
    %c0_i32 = arith.constant 0 : i32
    %c0_i32_0 = arith.constant 0 : i32
    %c0_i32_1 = arith.constant 0 : i32
    return %c0_i32, %c0_i32_0 : i32, i32
  }
  func.func @transform_3(%arg0: i32) -> (i32, i32) {
    %c0_i32 = arith.constant 0 : i32
    %c0_i32_0 = arith.constant 0 : i32
    %c0_i32_1 = arith.constant 0 : i32
    return %c0_i32, %c0_i32_0 : i32, i32
  }
  func.func @transform_4(%arg0: i32) -> (i32, i32) {
    %c0_i32 = arith.constant 0 : i32
    %c0_i32_0 = arith.constant 0 : i32
    %c0_i32_1 = arith.constant 0 : i32
    return %c0_i32, %c0_i32_0 : i32, i32
  }
  func.func @transform_5(%arg0: i32) -> (i32, i32, i32) {
    %c0_i32 = arith.constant 0 : i32
    %c0_i32_0 = arith.constant 0 : i32
    %c0_i32_1 = arith.constant 0 : i32
    return %arg0, %c0_i32, %c0_i32_0 : i32, i32, i32
  }
}

</mosaic_0001>

<llo_original>
// kernel: tpu_custom_call.1
$region0: #{tpu_custom_call.1}
  #allocation0 [shape = 'u32[]', space=smem, size = 0x4, offset = 0x4, fixed_abs, tag = 'smem constant byte address 0x4 - core index']
  #allocation1 [shape = 'u32[144,128]{1,0:T(1,128)}', space=vmem, size = 0x12000, scoped, tag = 'internal scratch']
  %s0 = inlined_call_operand.vmem [shape: f32[2,8,4], index: 0, kind: input, shape index: {}]
  %s1 = inlined_call_operand.vmem [shape: bf16[5,96], index: 1, kind: input, shape index: {}]
  %s2 = inlined_call_operand.vmem [shape: bf16[33,32], index: 2, kind: input, shape index: {}]
  %s3 = inlined_call_operand.vmem [shape: bf16[33,96], index: 3, kind: input, shape index: {}]
  %s4 = inlined_call_operand.vmem [shape: bf16[33,32], index: 4, kind: input, shape index: {}]
  %s5 = inlined_call_operand.hbm [shape: f32[2,8,32], index: 5, kind: output, shape index: {}]
  %s6 = sld [smem:[#allocation0]]
  $region53: #{tpu_custom_call.1} parent=0
    _
  %s8 = ssub.s32 1, %s6
  %s9 = scalar_select 0, %s8, %s6
  $region1: #{tpu_custom_call.1} parent=0
    #allocation2 [shape = 'u8[8192]{0}', space=vmem, size = 0x2000, scoped, tag = 'output window, operand 0']
    #allocation3 [shape = 's32[2]{0}', space=sflag, size = 0x8, scoped, tag = 'scoped memory for tpu_custom_call.1']
    %10 = vsyncpa [#allocation3], 0
    %s11 = scalar_lea.sflag [#allocation3], 1
    %12 = vsyncpa %s11, 0
    loop: start=0, step=1, limit=4
    $region2: #{tpu_custom_call.1} parent=1 // loop_pre_header
      _
    $region3: #{tpu_custom_call.1} parent=1 // loop_header
      %s14 = sphi 0, %s18
      %p15 = scmp.ge.s32.totalorder %s14, 4
      %s24 = sphi 0, %s26
      %s27 = sphi 0, %s24
      %s28 = sphi 0, %s27
      %s44 = sphi 0, %s28
      %s48 = sphi 0, %s48
      %s50 = sphi 0, %s48
      %s51 = sphi 0, %s50
      %s65 = sphi 0, %s51
      %s69 = sphi 0, %s69
      %s71 = sphi 0, %s69
      %s72 = sphi 0, %s71
      %s86 = sphi 0, %s72
      %s90 = sphi 0, %s90
      %s92 = sphi 0, %s90
      %s93 = sphi 0, %s92
      %s107 = sphi 0, %s93
      %s111 = sphi 0, %s111
      %s113 = sphi 0, %s111
      %s114 = sphi 0, %s113
      %s128 = sphi 0, %s114
      %s134 = sphi 0, %s136
      %s137 = sphi 0, %s134
      %s138 = sphi 0, %s137
      %s154 = sphi 0, %s138
    $region4: #{tpu_custom_call.1} parent=1 // loop_header_branch
      %17 = sbr.rel (%p15) target = $region8
    $region5: #{tpu_custom_call.1} parent=1 // loop_body
      %s19 = ssub.s32 %s14, 1
      %s20 = ssub.s32 %s14, 2
      %s21 = sadd.s32 %s14, 1
      %s22 = ssub.s32 %s14, %s21
      %p23 = scmp.eq.s32.totalorder %s22, 0
      %s25 = sadd.s32 %s24, 1
      %s26 = scalar_select %p23, %s24, %s25
      %p29 = pneg %p23
      %p30 = scmp.eq.s32.totalorder %s14, 1
      %p31 = por %p29, %p30
      %p32 = scmp.ne.s32.totalorder %s24, %s27
      %p33 = scmp.eq.s32.totalorder %s14, 0
      %p34 = por %p32, %p33
      %p35 = scmp.ne.s32.totalorder %s24, %s27
      %p36 = scmp.eq.s32.totalorder %s19, 1
      %p37 = por %p35, %p36
      %p38 = scmp.ne.s32.totalorder %s27, %s28
      %p39 = scmp.eq.s32.totalorder %s19, 0
      %p40 = por %p38, %p39
      %p41 = scmp.ne.s32.totalorder %s27, %s28
      %p42 = scmp.eq.s32.totalorder %s20, 1
      %p43 = por %p41, %p42
      %p45 = scmp.ne.s32.totalorder %s28, %s44
      %p46 = scmp.eq.s32.totalorder %s20, 0
      %p47 = por %p45, %p46
      %s49 = sadd.s32 %s48, 1
      %p52 = scmp.eq.s32.totalorder %s14, 1
      %p53 = scmp.ne.s32.totalorder %s48, %s50
      %p54 = scmp.eq.s32.totalorder %s14, 0
      %p55 = por %p53, %p54
      %p56 = scmp.ne.s32.totalorder %s48, %s50
      %p57 = scmp.eq.s32.totalorder %s19, 1
      %p58 = por %p56, %p57
      %p59 = scmp.ne.s32.totalorder %s50, %s51
      %p60 = scmp.eq.s32.totalorder %s19, 0
      %p61 = por %p59, %p60
      %p62 = scmp.ne.s32.totalorder %s50, %s51
      %p63 = scmp.eq.s32.totalorder %s20, 1
      %p64 = por %p62, %p63
      %p66 = scmp.ne.s32.totalorder %s51, %s65
      %p67 = scmp.eq.s32.totalorder %s20, 0
      %p68 = por %p66, %p67
      %s70 = sadd.s32 %s69, 1
      %p73 = scmp.eq.s32.totalorder %s14, 1
      %p74 = scmp.ne.s32.totalorder %s69, %s71
      %p75 = scmp.eq.s32.totalorder %s14, 0
      %p76 = por %p74, %p75
      %p77 = scmp.ne.s32.totalorder %s69, %s71
      %p78 = scmp.eq.s32.totalorder %s19, 1
      %p79 = por %p77, %p78
      %p80 = scmp.ne.s32.totalorder %s71, %s72
      %p81 = scmp.eq.s32.totalorder %s19, 0
      %p82 = por %p80, %p81
      %p83 = scmp.ne.s32.totalorder %s71, %s72
      %p84 = scmp.eq.s32.totalorder %s20, 1
      %p85 = por %p83, %p84
      %p87 = scmp.ne.s32.totalorder %s72, %s86
      %p88 = scmp.eq.s32.totalorder %s20, 0
      %p89 = por %p87, %p88
      %s91 = sadd.s32 %s90, 1
      %p94 = scmp.eq.s32.totalorder %s14, 1
      %p95 = scmp.ne.s32.totalorder %s90, %s92
      %p96 = scmp.eq.s32.totalorder %s14, 0
      %p97 = por %p95, %p96
      %p98 = scmp.ne.s32.totalorder %s90, %s92
      %p99 = scmp.eq.s32.totalorder %s19, 1
      %p100 = por %p98, %p99
      %p101 = scmp.ne.s32.totalorder %s92, %s93
      %p102 = scmp.eq.s32.totalorder %s19, 0
      %p103 = por %p101, %p102
      %p104 = scmp.ne.s32.totalorder %s92, %s93
      %p105 = scmp.eq.s32.totalorder %s20, 1
      %p106 = por %p104, %p105
      %p108 = scmp.ne.s32.totalorder %s93, %s107
      %p109 = scmp.eq.s32.totalorder %s20, 0
      %p110 = por %p108, %p109
      %s112 = sadd.s32 %s111, 1
      %p115 = scmp.eq.s32.totalorder %s14, 1
      %p116 = scmp.ne.s32.totalorder %s111, %s113
      %p117 = scmp.eq.s32.totalorder %s14, 0
      %p118 = por %p116, %p117
      %p119 = scmp.ne.s32.totalorder %s111, %s113
      %p120 = scmp.eq.s32.totalorder %s19, 1
      %p121 = por %p119, %p120
      %p122 = scmp.ne.s32.totalorder %s113, %s114
      %p123 = scmp.eq.s32.totalorder %s19, 0
      %p124 = por %p122, %p123
      %p125 = scmp.ne.s32.totalorder %s113, %s114
      %p126 = scmp.eq.s32.totalorder %s20, 1
      %p127 = por %p125, %p126
      %p129 = scmp.ne.s32.totalorder %s114, %s128
      %p130 = scmp.eq.s32.totalorder %s20, 0
      %p131 = por %p129, %p130
      %s132 = ssub.s32 %s14, %s21
      %p133 = scmp.eq.s32.totalorder %s132, 0
      %s135 = sadd.s32 %s134, 1
      %s136 = scalar_select %p133, %s134, %s135
      %p139 = pneg %p133
      %p140 = scmp.eq.s32.totalorder %s14, 1
      %p141 = por %p139, %p140
      %p142 = scmp.ne.s32.totalorder %s134, %s137
      %p143 = scmp.eq.s32.totalorder %s14, 0
      %p144 = por %p142, %p143
      %p145 = scmp.ne.s32.totalorder %s134, %s137
      %p146 = scmp.eq.s32.totalorder %s19, 1
      %p147 = por %p145, %p146
      %p148 = scmp.ne.s32.totalorder %s137, %s138
      %p149 = scmp.eq.s32.totalorder %s19, 0
      %p150 = por %p148, %p149
      %p151 = scmp.ne.s32.totalorder %s137, %s138
      %p152 = scmp.eq.s32.totalorder %s20, 1
      %p153 = por %p151, %p152
      %p155 = scmp.ne.s32.totalorder %s138, %s154
      %p156 = scmp.eq.s32.totalorder %s20, 0
      %p157 = por %p155, %p156
      %p158 = scmp.le.s32.totalorder 1, %s14
      %p159 = scmp.lt.s32.totalorder %s14, 3
      %p160 = pnand %p158, %p159
      %p161 = pneg %p160
      // Predicated region
      $region9: #{tpu_custom_call.1} parent=5 // pred_check
        _
      $region10: #{tpu_custom_call.1} parent=5 // pred_check_branch
        %163 = sbr.rel (%p160) target = $region12
      $region11: #{tpu_custom_call.1} parent=5 // pred_region
        %s164 = ssub.s32 %s14, 1
        // Predicated region
        $region13: #{tpu_custom_call.1} parent=11 // pred_check
          %p165 = pneg %p61
        $region14: #{tpu_custom_call.1} parent=11 // pred_check_branch
          %167 = sbr.rel (%p165) target = $region16
        $region15: #{tpu_custom_call.1} parent=11 // pred_region
          _
        $region16: #{tpu_custom_call.1} parent=11 // pred_fallthru
          _
        // Predicated region
        $region17: #{tpu_custom_call.1} parent=11 // pred_check
          %p168 = pneg %p82
        $region18: #{tpu_custom_call.1} parent=11 // pred_check_branch
          %170 = sbr.rel (%p168) target = $region20
        $region19: #{tpu_custom_call.1} parent=11 // pred_region
          _
        $region20: #{tpu_custom_call.1} parent=11 // pred_fallthru
          _
        // Predicated region
        $region21: #{tpu_custom_call.1} parent=11 // pred_check
          %p171 = pneg %p103
        $region22: #{tpu_custom_call.1} parent=11 // pred_check_branch
          %173 = sbr.rel (%p171) target = $region24
        $region23: #{tpu_custom_call.1} parent=11 // pred_region
          _
        $region24: #{tpu_custom_call.1} parent=11 // pred_fallthru
          _
        // Predicated region
        $region25: #{tpu_custom_call.1} parent=11 // pred_check
          %p174 = pneg %p124
        $region26: #{tpu_custom_call.1} parent=11 // pred_check_branch
          %176 = sbr.rel (%p174) target = $region28
        $region27: #{tpu_custom_call.1} parent=11 // pred_region
          _
        $region28: #{tpu_custom_call.1} parent=11 // pred_fallthru
          _
      $region12: #{tpu_custom_call.1} parent=5 // pred_fallthru
        _
      %p177 = scmp.lt.s32.totalorder %s14, 2
      // Predicated region
      $region29: #{tpu_custom_call.1} parent=5 // pred_check
        %p178 = pneg %p177
      $region30: #{tpu_custom_call.1} parent=5 // pred_check_branch
        %180 = sbr.rel (%p178) target = $region32
      $region31: #{tpu_custom_call.1} parent=5 // pred_region
        // Predicated region
        $region33: #{tpu_custom_call.1} parent=31 // pred_check
          %p181 = pneg %p34
        $region34: #{tpu_custom_call.1} parent=31 // pred_check_branch
          %183 = sbr.rel (%p181) target = $region36
        $region35: #{tpu_custom_call.1} parent=31 // pred_region
          %p184 = scmp.lt.s32.totalorder %s14, 1
          %s185 = scalar_select %p184, %s14, 1
          %s186 = smul.addr %s185, 8
          %s187 = scalar_lea.vmem %s0, %s186
        $region36: #{tpu_custom_call.1} parent=31 // pred_fallthru
          _
      $region32: #{tpu_custom_call.1} parent=5 // pred_fallthru
        _
      %p188 = scmp.le.s32.totalorder 1, %s14
      %p189 = scmp.lt.s32.totalorder %s14, 3
      %p190 = pnand %p188, %p189
      %p191 = pneg %p190
      // Predicated region
      $region37: #{tpu_custom_call.1} parent=5 // pred_check
        _
      $region38: #{tpu_custom_call.1} parent=5 // pred_check_branch
        %193 = sbr.rel (%p190) target = $region40
      $region39: #{tpu_custom_call.1} parent=5 // pred_region
        %s194 = ssub.s32 %s14, 1
        %p195 = scmp.lt.s32.totalorder %s19, 1
        %s196 = scalar_select %p195, %s19, 1
        %s197 = smul.addr %s196, 8
        %s198 = scalar_lea.vmem %s0, %s197
        %p199 = pneg %p40
        %p200 = pneg %p37
        %p201 = pneg %p61
        %p202 = pneg %p58
        %p203 = pneg %p82
        %p204 = pneg %p79
        %p205 = pneg %p103
        %p206 = pneg %p100
        %p207 = pneg %p124
        %p208 = pneg %p121
        %p209 = pneg %p150
        %p210 = pneg %p147
        %s211 = sand.u32 %s137, 1
        %s212 = scalar_lea.sflag [#allocation3], %s211
        %s213 = sand.u32 %s137, 1
        %s214 = smul.addr %s213, 8
        %s215 = scalar_lea.vmem [#allocation2], %s214
        %p216 = scmp.lt.s32.totalorder %s19, 1
        %s217 = scalar_select %p216, %s19, 1
        %s218 = smul.addr %s217, 8
        %s219 = scalar_lea.vmem %s0, %s218
        %v221 = vld [vmem:[%s219] sm:$0xff]
        %v222 = vld [vmem:[%s1] sm:$0x7]
        %v223 = vld [vmem:[%s2] sm:$0xf]
        %v224 = vld [vmem:[%s2 + $0x4] sm:$0xf]
        %v225 = vld [vmem:[%s2 + $0x8] sm:$0xf]
        %v226 = vld [vmem:[%s2 + $0xc] sm:$0xf]
        %v227 = vld [vmem:[%s2 + $0x10] sm:$0x1]
        %vm228 = vcmask 31744
        %v229 = vsel %vm228, %v221, 1.0
        %v230 = vpack.c.bf16 %v229, %v229
        %vm231 = vcmask 39936
        %v233 = vsel %vm231, %v230, 0
        %vm235 = vcmask 1041408
        %vm236 = vcmask 1042432
        %v237 = vsel %vm235, 4294967295, 65535
        %v238 = vsel %vm236, %v237, 0
        %v240 = vand.u32 %v222, %v238
        %242 = vmatprep.subr.bf16.mxu0 0
        %243 = vmatpush1.bf16.msra.mxu0 %v240
        %244 = vmatprep.subr.bf16.mxu0 0
        %245 = vmatpush1.bf16.msra.mxu0 0
        %246 = vmatprep.subr.bf16.mxu0 0
        %247 = vmatpush1.bf16.msra.mxu0 0
        %248 = vmatprep.subr.bf16.mxu0 0
        %249 = vmatpush1.bf16.msra.mxu0 0
        %250 = vmatprep.subr.bf16.mxu0 0
        %251 = vmatpush1.bf16.msra.mxu0 0
        %252 = vmatprep.subr.bf16.mxu0 0
        %253 = vmatpush1.bf16.msra.mxu0 0
        %254 = vmatprep.subr.bf16.mxu0 0
        %255 = vmatpush1.bf16.msra.mxu0 0
        %256 = vmatprep.subr.bf16.mxu0 0
        %257 = vmatpush1.bf16.msra.mxu0 0
        %258 = vmatprep.subr.bf16.mxu0 0
        %259 = vmatpush1.bf16.msra.mxu0 0
        %260 = vmatprep.subr.bf16.mxu0 0
        %261 = vmatpush1.bf16.msra.mxu0 0
        %262 = vmatprep.subr.bf16.mxu0 0
        %263 = vmatpush1.bf16.msra.mxu0 0
        %264 = vmatprep.subr.bf16.mxu0 0
        %265 = vmatpush1.bf16.msra.mxu0 0
        %266 = vmatprep.subr.bf16.mxu0 0
        %267 = vmatpush1.bf16.msra.mxu0 0
        %268 = vmatprep.subr.bf16.mxu0 0
        %269 = vmatpush1.bf16.msra.mxu0 0
        %270 = vmatprep.subr.bf16.mxu0 0
        %271 = vmatpush1.bf16.msra.mxu0 0
        %272 = vmatprep.subr.bf16.mxu0 0
        %273 = vmatpush1.bf16.msra.mxu0 0
        %274 = vmatprep.mubr.bf16.mxu0 0
        %275 = vmatmul.mubr.bf16.gmra.mrb[0].mxu0 %v233
        %v276 = vpop.f32.mrb[0].mxu0
        %v277 = vadd.f32 0.0, %v276
        %v278 = vpop.f32.mrb[0].mxu0
        %v279 = vpop.f32.mrb[0].mxu0
        %v280 = vpop.f32.mrb[0].mxu0
        %281 = vdwg.mxu0
        %283 = vrot.lane.b32.xlu0 %v277, 120
        %v284 = vpop.permute.xlu0 %283
        %286 = vrot.lane.b32.xlu0 %v277, 112
        %v287 = vpop.permute.xlu0 %286
        %289 = vrot.lane.b32.xlu0 %v277, 104
        %v290 = vpop.permute.xlu0 %289
        %v292 = vpack.c.bf16 %v277, %v277
        %v293 = vpack.c.bf16 %v284, %v284
        %v294 = vpack.c.bf16 %v287, %v287
        %v295 = vpack.c.bf16 %v290, %v290
        %297 = vrot.lane.b32.xlu0 %v292, 96
        %v298 = vpop.permute.xlu0 %297
        %vm299 = vcmask 64512
        %v301 = vsel %vm299, %v292, 0
        %v304 = vsel %vm299, %v298, 0
        %306 = vmatprep.subr.bf16.mxu0 0
        %307 = vmatpush1.bf16.xpose.msra.mxu0 %v304
        %308 = vmatprep.subr.bf16.mxu0 0
        %309 = vmatpush1.bf16.xpose.msra.mxu0 0
        %310 = vmatprep.subr.bf16.mxu0 0
        %311 = vmatpush1.bf16.xpose.msra.mxu0 0
        %312 = vmatprep.subr.bf16.mxu0 0
        %313 = vmatpush1.bf16.xpose.msra.mxu0 0
        %314 = vmatprep.subr.bf16.mxu0 0
        %315 = vmatpush1.bf16.xpose.msra.mxu0 0
        %316 = vmatprep.subr.bf16.mxu0 0
        %317 = vmatpush1.bf16.xpose.msra.mxu0 0
        %318 = vmatprep.subr.bf16.mxu0 0
        %319 = vmatpush1.bf16.xpose.msra.mxu0 0
        %320 = vmatprep.subr.bf16.mxu0 0
        %321 = vmatpush1.bf16.xpose.msra.mxu0 0
        %322 = vmatprep.subr.bf16.mxu0 0
        %323 = vmatpush1.bf16.xpose.msra.mxu0 0
        %324 = vmatprep.subr.bf16.mxu0 0
        %325 = vmatpush1.bf16.xpose.msra.mxu0 0
        %326 = vmatprep.subr.bf16.mxu0 0
        %327 = vmatpush1.bf16.xpose.msra.mxu0 0
        %328 = vmatprep.subr.bf16.mxu0 0
        %329 = vmatpush1.bf16.xpose.msra.mxu0 0
        %330 = vmatprep.subr.bf16.mxu0 0
        %331 = vmatpush1.bf16.xpose.msra.mxu0 0
        %332 = vmatprep.subr.bf16.mxu0 0
        %333 = vmatpush1.bf16.xpose.msra.mxu0 0
        %334 = vmatprep.subr.bf16.mxu0 0
        %335 = vmatpush1.bf16.xpose.msra.mxu0 0
        %336 = vmatprep.subr.bf16.mxu0 0
        %337 = vmatpush1.bf16.xpose.msra.mxu0 0
        %338 = vmatprep.mubr.bf16.mxu0 0
        %339 = vmatmul.mubr.bf16.gmra.mrb[0].mxu0 %v301
        %v340 = vpop.f32.mrb[0].mxu0
        %v341 = vadd.f32 0.0, %v340
        %v342 = vpop.f32.mrb[0].mxu0
        %v343 = vpop.f32.mrb[0].mxu0
        %v344 = vpop.f32.mrb[0].mxu0
        %345 = vdwg.mxu0
        %347 = vrot.lane.b32.xlu0 %v293, 96
        %v348 = vpop.permute.xlu0 %347
        %v350 = vsel %vm299, %v293, 0
        %v353 = vsel %vm299, %v348, 0
        %355 = vmatprep.subr.bf16.mxu0 0
        %356 = vmatpush1.bf16.xpose.msra.mxu0 %v353
        %357 = vmatprep.subr.bf16.mxu0 0
        %358 = vmatpush1.bf16.xpose.msra.mxu0 0
        %359 = vmatprep.subr.bf16.mxu0 0
        %360 = vmatpush1.bf16.xpose.msra.mxu0 0
        %361 = vmatprep.subr.bf16.mxu0 0
        %362 = vmatpush1.bf16.xpose.msra.mxu0 0
        %363 = vmatprep.subr.bf16.mxu0 0
        %364 = vmatpush1.bf16.xpose.msra.mxu0 0
        %365 = vmatprep.subr.bf16.mxu0 0
        %366 = vmatpush1.bf16.xpose.msra.mxu0 0
        %367 = vmatprep.subr.bf16.mxu0 0
        %368 = vmatpush1.bf16.xpose.msra.mxu0 0
        %369 = vmatprep.subr.bf16.mxu0 0
        %370 = vmatpush1.bf16.xpose.msra.mxu0 0
        %371 = vmatprep.subr.bf16.mxu0 0
        %372 = vmatpush1.bf16.xpose.msra.mxu0 0
        %373 = vmatprep.subr.bf16.mxu0 0
        %374 = vmatpush1.bf16.xpose.msra.mxu0 0
        %375 = vmatprep.subr.bf16.mxu0 0
        %376 = vmatpush1.bf16.xpose.msra.mxu0 0
        %377 = vmatprep.subr.bf16.mxu0 0
        %378 = vmatpush1.bf16.xpose.msra.mxu0 0
        %379 = vmatprep.subr.bf16.mxu0 0
        %380 = vmatpush1.bf16.xpose.msra.mxu0 0
        %381 = vmatprep.subr.bf16.mxu0 0
        %382 = vmatpush1.bf16.xpose.msra.mxu0 0
        %383 = vmatprep.subr.bf16.mxu0 0
        %384 = vmatpush1.bf16.xpose.msra.mxu0 0
        %385 = vmatprep.subr.bf16.mxu0 0
        %386 = vmatpush1.bf16.xpose.msra.mxu0 0
        %387 = vmatprep.mubr.bf16.mxu0 0
        %388 = vmatmul.mubr.bf16.gmra.mrb[0].mxu0 %v350
        %v389 = vpop.f32.mrb[0].mxu0
        %v390 = vadd.f32 0.0, %v389
        %v391 = vpop.f32.mrb[0].mxu0
        %v392 = vpop.f32.mrb[0].mxu0
        %v393 = vpop.f32.mrb[0].mxu0
        %394 = vdwg.mxu0
        %396 = vrot.lane.b32.xlu0 %v294, 96
        %v397 = vpop.permute.xlu0 %396
        %v399 = vsel %vm299, %v294, 0
        %v402 = vsel %vm299, %v397, 0
        %404 = vmatprep.subr.bf16.mxu0 0
        %405 = vmatpush1.bf16.xpose.msra.mxu0 %v402
        %406 = vmatprep.subr.bf16.mxu0 0
        %407 = vmatpush1.bf16.xpose.msra.mxu0 0
        %408 = vmatprep.subr.bf16.mxu0 0
        %409 = vmatpush1.bf16.xpose.msra.mxu0 0
        %410 = vmatprep.subr.bf16.mxu0 0
        %411 = vmatpush1.bf16.xpose.msra.mxu0 0
        %412 = vmatprep.subr.bf16.mxu0 0
        %413 = vmatpush1.bf16.xpose.msra.mxu0 0
        %414 = vmatprep.subr.bf16.mxu0 0
        %415 = vmatpush1.bf16.xpose.msra.mxu0 0
        %416 = vmatprep.subr.bf16.mxu0 0
        %417 = vmatpush1.bf16.xpose.msra.mxu0 0
        %418 = vmatprep.subr.bf16.mxu0 0
        %419 = vmatpush1.bf16.xpose.msra.mxu0 0
        %420 = vmatprep.subr.bf16.mxu0 0
        %421 = vmatpush1.bf16.xpose.msra.mxu0 0
        %422 = vmatprep.subr.bf16.mxu0 0
        %423 = vmatpush1.bf16.xpose.msra.mxu0 0
        %424 = vmatprep.subr.bf16.mxu0 0
        %425 = vmatpush1.bf16.xpose.msra.mxu0 0
        %426 = vmatprep.subr.bf16.mxu0 0
        %427 = vmatpush1.bf16.xpose.msra.mxu0 0
        %428 = vmatprep.subr.bf16.mxu0 0
        %429 = vmatpush1.bf16.xpose.msra.mxu0 0
        %430 = vmatprep.subr.bf16.mxu0 0
        %431 = vmatpush1.bf16.xpose.msra.mxu0 0
        %432 = vmatprep.subr.bf16.mxu0 0
        %433 = vmatpush1.bf16.xpose.msra.mxu0 0
        %434 = vmatprep.subr.bf16.mxu0 0
        %435 = vmatpush1.bf16.xpose.msra.mxu0 0
        %436 = vmatprep.mubr.bf16.mxu0 0
        %437 = vmatmul.mubr.bf16.gmra.mrb[0].mxu0 %v399
        %v438 = vpop.f32.mrb[0].mxu0
        %v439 = vadd.f32 0.0, %v438
        %v440 = vpop.f32.mrb[0].mxu0
        %v441 = vpop.f32.mrb[0].mxu0
        %v442 = vpop.f32.mrb[0].mxu0
        %443 = vdwg.mxu0
        %445 = vrot.lane.b32.xlu0 %v295, 96
        %v446 = vpop.permute.xlu0 %445
        %v448 = vsel %vm299, %v295, 0
        %v451 = vsel %vm299, %v446, 0
        %453 = vmatprep.subr.bf16.mxu0 0
        %454 = vmatpush1.bf16.xpose.msra.mxu0 %v451
        %455 = vmatprep.subr.bf16.mxu0 0
        %456 = vmatpush1.bf16.xpose.msra.mxu0 0
        %457 = vmatprep.subr.bf16.mxu0 0
        %458 = vmatpush1.bf16.xpose.msra.mxu0 0
        %459 = vmatprep.subr.bf16.mxu0 0
        %460 = vmatpush1.bf16.xpose.msra.mxu0 0
        %461 = vmatprep.subr.bf16.mxu0 0
        %462 = vmatpush1.bf16.xpose.msra.mxu0 0
        %463 = vmatprep.subr.bf16.mxu0 0
        %464 = vmatpush1.bf16.xpose.msra.mxu0 0
        %465 = vmatprep.subr.bf16.mxu0 0
        %466 = vmatpush1.bf16.xpose.msra.mxu0 0
        %467 = vmatprep.subr.bf16.mxu0 0
        %468 = vmatpush1.bf16.xpose.msra.mxu0 0
        %469 = vmatprep.subr.bf16.mxu0 0
        %470 = vmatpush1.bf16.xpose.msra.mxu0 0
        %471 = vmatprep.subr.bf16.mxu0 0
        %472 = vmatpush1.bf16.xpose.msra.mxu0 0
        %473 = vmatprep.subr.bf16.mxu0 0
        %474 = vmatpush1.bf16.xpose.msra.mxu0 0
        %475 = vmatprep.subr.bf16.mxu0 0
        %476 = vmatpush1.bf16.xpose.msra.mxu0 0
        %477 = vmatprep.subr.bf16.mxu0 0
        %478 = vmatpush1.bf16.xpose.msra.mxu0 0
        %479 = vmatprep.subr.bf16.mxu0 0
        %480 = vmatpush1.bf16.xpose.msra.mxu0 0
        %481 = vmatprep.subr.bf16.mxu0 0
        %482 = vmatpush1.bf16.xpose.msra.mxu0 0
        %483 = vmatprep.subr.bf16.mxu0 0
        %484 = vmatpush1.bf16.xpose.msra.mxu0 0
        %485 = vmatprep.mubr.bf16.mxu0 0
        %486 = vmatmul.mubr.bf16.gmra.mrb[0].mxu0 %v448
        %v487 = vpop.f32.mrb[0].mxu0
        %v488 = vadd.f32 0.0, %v487
        %v489 = vpop.f32.mrb[0].mxu0
        %v490 = vpop.f32.mrb[0].mxu0
        %v491 = vpop.f32.mrb[0].mxu0
        %492 = vdwg.mxu0
        %v493 = vsel %vm299, %v341, -inf
        %494 = vmax.xlane.f32.xlu0 %v493
        %v495 = vpop.xlane.xlu0 %494
        %v496 = vsel %vm299, %v390, -inf
        %497 = vmax.xlane.f32.xlu0 %v496
        %v498 = vpop.xlane.xlu0 %497
        %v499 = vsel %vm299, %v439, -inf
        %500 = vmax.xlane.f32.xlu0 %v499
        %v501 = vpop.xlane.xlu0 %500
        %v502 = vsel %vm299, %v488, -inf
        %503 = vmax.xlane.f32.xlu0 %v502
        %v504 = vpop.xlane.xlu0 %503
        %v505 = vsub.f32 %v341, %v495
        %v506 = vsub.f32 %v390, %v498
        %v507 = vsub.f32 %v439, %v501
        %v508 = vsub.f32 %v488, %v504
        %v509 = vmul.f32 %v505, 1.442695
        %v510 = vpow.pop %v509
        %v511 = vmul.f32 %v506, 1.442695
        %v512 = vpow.pop %v511
        %v513 = vmul.f32 %v507, 1.442695
        %v514 = vpow.pop %v513
        %v515 = vmul.f32 %v508, 1.442695
        %v516 = vpow.pop %v515
        %v517 = vsel %vm299, %v510, 0.0
        %518 = vadd.xlane.f32.xlu0 %v517
        %v519 = vpop.xlane.xlu0 %518
        %v520 = vsel %vm299, %v512, 0.0
        %521 = vadd.xlane.f32.xlu0 %v520
        %v522 = vpop.xlane.xlu0 %521
        %v523 = vsel %vm299, %v514, 0.0
        %524 = vadd.xlane.f32.xlu0 %v523
        %v525 = vpop.xlane.xlu0 %524
        %v526 = vsel %vm299, %v516, 0.0
        %527 = vadd.xlane.f32.xlu0 %v526
        %v528 = vpop.xlane.xlu0 %527
        %v529 = vrcp.pop %v519
        %v530 = vmul.f32 %v510, %v529
        %v531 = vrcp.pop %v522
        %v532 = vmul.f32 %v512, %v531
        %v533 = vrcp.pop %v525
        %v534 = vmul.f32 %v514, %v533
        %v535 = vrcp.pop %v528
        %v536 = vmul.f32 %v516, %v535
        %v537 = vpack.c.bf16 %v530, %v530
        %v538 = vpack.c.bf16 %v532, %v532
        %v539 = vpack.c.bf16 %v534, %v534
        %v540 = vpack.c.bf16 %v536, %v536
        %541 = vrot.lane.b32.xlu0 %v292, 64
        %v542 = vpop.permute.xlu0 %541
        %v544 = vsel %vm299, %v537, 0
        %vm546 = vcmask 1043456
        %v548 = vsel %vm546, %v542, 0
        %550 = vmatprep.subr.bf16.mxu0 0
        %551 = vmatpush1.bf16.msra.mxu0 %v548
        %552 = vmatprep.subr.bf16.mxu0 0
        %553 = vmatpush1.bf16.msra.mxu0 0
        %554 = vmatprep.subr.bf16.mxu0 0
        %555 = vmatpush1.bf16.msra.mxu0 0
        %556 = vmatprep.subr.bf16.mxu0 0
        %557 = vmatpush1.bf16.msra.mxu0 0
        %558 = vmatprep.subr.bf16.mxu0 0
        %559 = vmatpush1.bf16.msra.mxu0 0
        %560 = vmatprep.subr.bf16.mxu0 0
        %561 = vmatpush1.bf16.msra.mxu0 0
        %562 = vmatprep.subr.bf16.mxu0 0
        %563 = vmatpush1.bf16.msra.mxu0 0
        %564 = vmatprep.subr.bf16.mxu0 0
        %565 = vmatpush1.bf16.msra.mxu0 0
        %566 = vmatprep.subr.bf16.mxu0 0
        %567 = vmatpush1.bf16.msra.mxu0 0
        %568 = vmatprep.subr.bf16.mxu0 0
        %569 = vmatpush1.bf16.msra.mxu0 0
        %570 = vmatprep.subr.bf16.mxu0 0
        %571 = vmatpush1.bf16.msra.mxu0 0
        %572 = vmatprep.subr.bf16.mxu0 0
        %573 = vmatpush1.bf16.msra.mxu0 0
        %574 = vmatprep.subr.bf16.mxu0 0
        %575 = vmatpush1.bf16.msra.mxu0 0
        %576 = vmatprep.subr.bf16.mxu0 0
        %577 = vmatpush1.bf16.msra.mxu0 0
        %578 = vmatprep.subr.bf16.mxu0 0
        %579 = vmatpush1.bf16.msra.mxu0 0
        %580 = vmatprep.subr.bf16.mxu0 0
        %581 = vmatpush1.bf16.msra.mxu0 0
        %582 = vmatprep.mubr.bf16.mxu0 0
        %583 = vmatmul.mubr.bf16.gmra.mrb[0].mxu0 %v544
        %v584 = vpop.f32.mrb[0].mxu0
        %v585 = vadd.f32 0.0, %v584
        %v586 = vpop.f32.mrb[0].mxu0
        %v587 = vpop.f32.mrb[0].mxu0
        %v588 = vpop.f32.mrb[0].mxu0
        %589 = vdwg.mxu0
        %590 = vrot.lane.b32.xlu0 %v293, 64
        %v591 = vpop.permute.xlu0 %590
        %v593 = vsel %vm299, %v538, 0
        %v596 = vsel %vm546, %v591, 0
        %598 = vmatprep.subr.bf16.mxu0 0
        %599 = vmatpush1.bf16.msra.mxu0 %v596
        %600 = vmatprep.subr.bf16.mxu0 0
        %601 = vmatpush1.bf16.msra.mxu0 0
        %602 = vmatprep.subr.bf16.mxu0 0
        %603 = vmatpush1.bf16.msra.mxu0 0
        %604 = vmatprep.subr.bf16.mxu0 0
        %605 = vmatpush1.bf16.msra.mxu0 0
        %606 = vmatprep.subr.bf16.mxu0 0
        %607 = vmatpush1.bf16.msra.mxu0 0
        %608 = vmatprep.subr.bf16.mxu0 0
        %609 = vmatpush1.bf16.msra.mxu0 0
        %610 = vmatprep.subr.bf16.mxu0 0
        %611 = vmatpush1.bf16.msra.mxu0 0
        %612 = vmatprep.subr.bf16.mxu0 0
        %613 = vmatpush1.bf16.msra.mxu0 0
        %614 = vmatprep.subr.bf16.mxu0 0
        %615 = vmatpush1.bf16.msra.mxu0 0
        %616 = vmatprep.subr.bf16.mxu0 0
        %617 = vmatpush1.bf16.msra.mxu0 0
        %618 = vmatprep.subr.bf16.mxu0 0
        %619 = vmatpush1.bf16.msra.mxu0 0
        %620 = vmatprep.subr.bf16.mxu0 0
        %621 = vmatpush1.bf16.msra.mxu0 0
        %622 = vmatprep.subr.bf16.mxu0 0
        %623 = vmatpush1.bf16.msra.mxu0 0
        %624 = vmatprep.subr.bf16.mxu0 0
        %625 = vmatpush1.bf16.msra.mxu0 0
        %626 = vmatprep.subr.bf16.mxu0 0
        %627 = vmatpush1.bf16.msra.mxu0 0
        %628 = vmatprep.subr.bf16.mxu0 0
        %629 = vmatpush1.bf16.msra.mxu0 0
        %630 = vmatprep.mubr.bf16.mxu0 0
        %631 = vmatmul.mubr.bf16.gmra.mrb[0].mxu0 %v593
        %v632 = vpop.f32.mrb[0].mxu0
        %v633 = vadd.f32 0.0, %v632
        %v634 = vpop.f32.mrb[0].mxu0
        %v635 = vpop.f32.mrb[0].mxu0
        %v636 = vpop.f32.mrb[0].mxu0
        %637 = vdwg.mxu0
        %638 = vrot.lane.b32.xlu0 %v294, 64
        %v639 = vpop.permute.xlu0 %638
        %v641 = vsel %vm299, %v539, 0
        %v644 = vsel %vm546, %v639, 0
        %646 = vmatprep.subr.bf16.mxu0 0
        %647 = vmatpush1.bf16.msra.mxu0 %v644
        %648 = vmatprep.subr.bf16.mxu0 0
        %649 = vmatpush1.bf16.msra.mxu0 0
        %650 = vmatprep.subr.bf16.mxu0 0
        %651 = vmatpush1.bf16.msra.mxu0 0
        %652 = vmatprep.subr.bf16.mxu0 0
        %653 = vmatpush1.bf16.msra.mxu0 0
        %654 = vmatprep.subr.bf16.mxu0 0
        %655 = vmatpush1.bf16.msra.mxu0 0
        %656 = vmatprep.subr.bf16.mxu0 0
        %657 = vmatpush1.bf16.msra.mxu0 0
        %658 = vmatprep.subr.bf16.mxu0 0
        %659 = vmatpush1.bf16.msra.mxu0 0
        %660 = vmatprep.subr.bf16.mxu0 0
        %661 = vmatpush1.bf16.msra.mxu0 0
        %662 = vmatprep.subr.bf16.mxu0 0
        %663 = vmatpush1.bf16.msra.mxu0 0
        %664 = vmatprep.subr.bf16.mxu0 0
        %665 = vmatpush1.bf16.msra.mxu0 0
        %666 = vmatprep.subr.bf16.mxu0 0
        %667 = vmatpush1.bf16.msra.mxu0 0
        %668 = vmatprep.subr.bf16.mxu0 0
        %669 = vmatpush1.bf16.msra.mxu0 0
        %670 = vmatprep.subr.bf16.mxu0 0
        %671 = vmatpush1.bf16.msra.mxu0 0
        %672 = vmatprep.subr.bf16.mxu0 0
        %673 = vmatpush1.bf16.msra.mxu0 0
        %674 = vmatprep.subr.bf16.mxu0 0
        %675 = vmatpush1.bf16.msra.mxu0 0
        %676 = vmatprep.subr.bf16.mxu0 0
        %677 = vmatpush1.bf16.msra.mxu0 0
        %678 = vmatprep.mubr.bf16.mxu0 0
        %679 = vmatmul.mubr.bf16.gmra.mrb[0].mxu0 %v641
        %v680 = vpop.f32.mrb[0].mxu0
        %v681 = vadd.f32 0.0, %v680
        %v682 = vpop.f32.mrb[0].mxu0
        %v683 = vpop.f32.mrb[0].mxu0
        %v684 = vpop.f32.mrb[0].mxu0
        %685 = vdwg.mxu0
        %686 = vrot.lane.b32.xlu0 %v295, 64
        %v687 = vpop.permute.xlu0 %686
        %v689 = vsel %vm299, %v540, 0
        %v692 = vsel %vm546, %v687, 0
        %694 = vmatprep.subr.bf16.mxu0 0
        %695 = vmatpush1.bf16.msra.mxu0 %v692
        %696 = vmatprep.subr.bf16.mxu0 0
        %697 = vmatpush1.bf16.msra.mxu0 0
        %698 = vmatprep.subr.bf16.mxu0 0
        %699 = vmatpush1.bf16.msra.mxu0 0
        %700 = vmatprep.subr.bf16.mxu0 0
        %701 = vmatpush1.bf16.msra.mxu0 0
        %702 = vmatprep.subr.bf16.mxu0 0
        %703 = vmatpush1.bf16.msra.mxu0 0
        %704 = vmatprep.subr.bf16.mxu0 0
        %705 = vmatpush1.bf16.msra.mxu0 0
        %706 = vmatprep.subr.bf16.mxu0 0
        %707 = vmatpush1.bf16.msra.mxu0 0
        %708 = vmatprep.subr.bf16.mxu0 0
        %709 = vmatpush1.bf16.msra.mxu0 0
        %710 = vmatprep.subr.bf16.mxu0 0
        %711 = vmatpush1.bf16.msra.mxu0 0
        %712 = vmatprep.subr.bf16.mxu0 0
        %713 = vmatpush1.bf16.msra.mxu0 0
        %714 = vmatprep.subr.bf16.mxu0 0
        %715 = vmatpush1.bf16.msra.mxu0 0
        %716 = vmatprep.subr.bf16.mxu0 0
        %717 = vmatpush1.bf16.msra.mxu0 0
        %718 = vmatprep.subr.bf16.mxu0 0
        %719 = vmatpush1.bf16.msra.mxu0 0
        %720 = vmatprep.subr.bf16.mxu0 0
        %721 = vmatpush1.bf16.msra.mxu0 0
        %722 = vmatprep.subr.bf16.mxu0 0
        %723 = vmatpush1.bf16.msra.mxu0 0
        %724 = vmatprep.subr.bf16.mxu0 0
        %725 = vmatpush1.bf16.msra.mxu0 0
        %726 = vmatprep.mubr.bf16.mxu0 0
        %727 = vmatmul.mubr.bf16.gmra.mrb[0].mxu0 %v689
        %v728 = vpop.f32.mrb[0].mxu0
        %v729 = vadd.f32 0.0, %v728
        %v730 = vpop.f32.mrb[0].mxu0
        %v731 = vpop.f32.mrb[0].mxu0
        %v732 = vpop.f32.mrb[0].mxu0
        %733 = vdwg.mxu0
        %735 = vrot.lane.b32.xlu0 %v633, 8
        %v736 = vpop.permute.xlu0 %735
        %739 = vrot.lane.b32.xlu0 %v681, 16
        %v740 = vpop.permute.xlu0 %739
        %743 = vrot.lane.b32.xlu0 %v729, 24
        %v744 = vpop.permute.xlu0 %743
        %v746 = vsel %vm299, %v585, %v736
        %vm747 = vcmask 130048
        %v748 = vsel %vm747, %v746, %v740
        %vm749 = vcmask 195584
        %v750 = vsel %vm749, %v748, %v744
        %v751 = vadd.f32 %v277, %v750
        %vm752 = vcmask 261120
        %v753 = vsel %vm752, %v751, 1.0
        %v754 = vpack.c.bf16 %v753, %v753
        %v760 = vunpack.c.l.b16 %v223
        %v761 = vunpack.c.l.b16 %v224
        %v762 = vunpack.c.l.b16 %v225
        %v763 = vunpack.c.l.b16 %v226
        %v764 = vunpack.c.l.b16 %v227
        %v765 = vpack.c.b16 %v761, %v760
        %v766 = vpack.c.b16 %v763, %v762
        %v767 = vpack.c.b16 %v764, %v764
        %vm770 = vcmask 269312
        %v772 = vsel %vm770, %v754, 0
        %vm774 = vcmask 1040384
        %v775 = vsel 0, 4294967295, 65535
        %v776 = vsel %vm774, %v775, 0
        %v778 = vand.u32 %v767, %v776
        %780 = vmatprep.subr.bf16.mxu0 0
        %781 = vmatpush1.bf16.msra.mxu0 %v765
        %782 = vmatprep.subr.bf16.mxu0 0
        %783 = vmatpush1.bf16.msra.mxu0 %v766
        %784 = vmatprep.subr.bf16.mxu0 0
        %785 = vmatpush1.bf16.msra.mxu0 %v778
        %786 = vmatprep.subr.bf16.mxu0 0
        %787 = vmatpush1.bf16.msra.mxu0 0
        %788 = vmatprep.subr.bf16.mxu0 0
        %789 = vmatpush1.bf16.msra.mxu0 0
        %790 = vmatprep.subr.bf16.mxu0 0
        %791 = vmatpush1.bf16.msra.mxu0 0
        %792 = vmatprep.subr.bf16.mxu0 0
        %793 = vmatpush1.bf16.msra.mxu0 0
        %794 = vmatprep.subr.bf16.mxu0 0
        %795 = vmatpush1.bf16.msra.mxu0 0
        %796 = vmatprep.subr.bf16.mxu0 0
        %797 = vmatpush1.bf16.msra.mxu0 0
        %798 = vmatprep.subr.bf16.mxu0 0
        %799 = vmatpush1.bf16.msra.mxu0 0
        %800 = vmatprep.subr.bf16.mxu0 0
        %801 = vmatpush1.bf16.msra.mxu0 0
        %802 = vmatprep.subr.bf16.mxu0 0
        %803 = vmatpush1.bf16.msra.mxu0 0
        %804 = vmatprep.subr.bf16.mxu0 0
        %805 = vmatpush1.bf16.msra.mxu0 0
        %806 = vmatprep.subr.bf16.mxu0 0
        %807 = vmatpush1.bf16.msra.mxu0 0
        %808 = vmatprep.subr.bf16.mxu0 0
        %809 = vmatpush1.bf16.msra.mxu0 0
        %810 = vmatprep.subr.bf16.mxu0 0
        %811 = vmatpush1.bf16.msra.mxu0 0
        %812 = vmatprep.mubr.bf16.mxu0 0
        %813 = vmatmul.mubr.bf16.gmra.mrb[0].mxu0 %v772
        %v814 = vpop.f32.mrb[0].mxu0
        %v815 = vadd.f32 0.0, %v814
        %v816 = vpop.f32.mrb[0].mxu0
        %v817 = vpop.f32.mrb[0].mxu0
        %v818 = vpop.f32.mrb[0].mxu0
        %819 = vdwg.mxu0
        %v820 = vmax.f32 %v815, 0.0
        %v821 = vadd.f32 %v751, %v820
        %v822 = vld [vmem:[%s3] sm:$0xf]
        %v823 = vld [vmem:[%s3 + $0x4] sm:$0xf]
        %v824 = vld [vmem:[%s3 + $0x8] sm:$0xf]
        %v825 = vld [vmem:[%s3 + $0xc] sm:$0xf]
        %v826 = vld [vmem:[%s3 + $0x10] sm:$0x1]
        %v827 = vld [vmem:[%s4] sm:$0xf]
        %v828 = vld [vmem:[%s4 + $0x4] sm:$0xf]
        %v829 = vld [vmem:[%s4 + $0x8] sm:$0xf]
        %v830 = vld [vmem:[%s4 + $0xc] sm:$0xf]
        %v831 = vld [vmem:[%s4 + $0x10] sm:$0x1]
        %v832 = vsel %vm752, %v821, 1.0
        %v833 = vpack.c.bf16 %v832, %v832
        %v839 = vunpack.c.l.b16 %v822
        %v840 = vunpack.c.l.b16 %v823
        %v841 = vunpack.c.l.b16 %v824
        %v842 = vunpack.c.l.b16 %v825
        %v843 = vunpack.c.l.b16 %v826
        %v844 = vpack.c.b16 %v840, %v839
        %v845 = vpack.c.b16 %v842, %v841
        %v846 = vpack.c.b16 %v843, %v843
        %v850 = vsel %vm770, %v833, 0
        %v853 = vand.u32 %v846, %v776
        %855 = vmatprep.subr.bf16.mxu0 0
        %856 = vmatpush1.bf16.msra.mxu0 %v844
        %857 = vmatprep.subr.bf16.mxu0 0
        %858 = vmatpush1.bf16.msra.mxu0 %v845
        %859 = vmatprep.subr.bf16.mxu0 0
        %860 = vmatpush1.bf16.msra.mxu0 %v853
        %861 = vmatprep.subr.bf16.mxu0 0
        %862 = vmatpush1.bf16.msra.mxu0 0
        %863 = vmatprep.subr.bf16.mxu0 0
        %864 = vmatpush1.bf16.msra.mxu0 0
        %865 = vmatprep.subr.bf16.mxu0 0
        %866 = vmatpush1.bf16.msra.mxu0 0
        %867 = vmatprep.subr.bf16.mxu0 0
        %868 = vmatpush1.bf16.msra.mxu0 0
        %869 = vmatprep.subr.bf16.mxu0 0
        %870 = vmatpush1.bf16.msra.mxu0 0
        %871 = vmatprep.subr.bf16.mxu0 0
        %872 = vmatpush1.bf16.msra.mxu0 0
        %873 = vmatprep.subr.bf16.mxu0 0
        %874 = vmatpush1.bf16.msra.mxu0 0
        %875 = vmatprep.subr.bf16.mxu0 0
        %876 = vmatpush1.bf16.msra.mxu0 0
        %877 = vmatprep.subr.bf16.mxu0 0
        %878 = vmatpush1.bf16.msra.mxu0 0
        %879 = vmatprep.subr.bf16.mxu0 0
        %880 = vmatpush1.bf16.msra.mxu0 0
        %881 = vmatprep.subr.bf16.mxu0 0
        %882 = vmatpush1.bf16.msra.mxu0 0
        %883 = vmatprep.subr.bf16.mxu0 0
        %884 = vmatpush1.bf16.msra.mxu0 0
        %885 = vmatprep.subr.bf16.mxu0 0
        %886 = vmatpush1.bf16.msra.mxu0 0
        %887 = vmatprep.mubr.bf16.mxu0 0
        %888 = vmatmul.mubr.bf16.gmra.mrb[0].mxu0 %v850
        %v889 = vpop.f32.mrb[0].mxu0
        %v890 = vadd.f32 0.0, %v889
        %v891 = vpop.f32.mrb[0].mxu0
        %v892 = vpop.f32.mrb[0].mxu0
        %v893 = vpop.f32.mrb[0].mxu0
        %894 = vdwg.mxu0
        %896 = vrot.lane.b32.xlu0 %v890, 120
        %v897 = vpop.permute.xlu0 %896
        %899 = vrot.lane.b32.xlu0 %v890, 112
        %v900 = vpop.permute.xlu0 %899
        %902 = vrot.lane.b32.xlu0 %v890, 104
        %v903 = vpop.permute.xlu0 %902
        %v905 = vpack.c.bf16 %v890, %v890
        %v906 = vpack.c.bf16 %v897, %v897
        %v907 = vpack.c.bf16 %v900, %v900
        %v908 = vpack.c.bf16 %v903, %v903
        %910 = vrot.lane.b32.xlu0 %v905, 96
        %v911 = vpop.permute.xlu0 %910
        %v913 = vsel %vm299, %v905, 0
        %v916 = vsel %vm299, %v911, 0
        %918 = vmatprep.subr.bf16.mxu0 0
        %919 = vmatpush1.bf16.xpose.msra.mxu0 %v916
        %920 = vmatprep.subr.bf16.mxu0 0
        %921 = vmatpush1.bf16.xpose.msra.mxu0 0
        %922 = vmatprep.subr.bf16.mxu0 0
        %923 = vmatpush1.bf16.xpose.msra.mxu0 0
        %924 = vmatprep.subr.bf16.mxu0 0
        %925 = vmatpush1.bf16.xpose.msra.mxu0 0
        %926 = vmatprep.subr.bf16.mxu0 0
        %927 = vmatpush1.bf16.xpose.msra.mxu0 0
        %928 = vmatprep.subr.bf16.mxu0 0
        %929 = vmatpush1.bf16.xpose.msra.mxu0 0
        %930 = vmatprep.subr.bf16.mxu0 0
        %931 = vmatpush1.bf16.xpose.msra.mxu0 0
        %932 = vmatprep.subr.bf16.mxu0 0
        %933 = vmatpush1.bf16.xpose.msra.mxu0 0
        %934 = vmatprep.subr.bf16.mxu0 0
        %935 = vmatpush1.bf16.xpose.msra.mxu0 0
        %936 = vmatprep.subr.bf16.mxu0 0
        %937 = vmatpush1.bf16.xpose.msra.mxu0 0
        %938 = vmatprep.subr.bf16.mxu0 0
        %939 = vmatpush1.bf16.xpose.msra.mxu0 0
        %940 = vmatprep.subr.bf16.mxu0 0
        %941 = vmatpush1.bf16.xpose.msra.mxu0 0
        %942 = vmatprep.subr.bf16.mxu0 0
        %943 = vmatpush1.bf16.xpose.msra.mxu0 0
        %944 = vmatprep.subr.bf16.mxu0 0
        %945 = vmatpush1.bf16.xpose.msra.mxu0 0
        %946 = vmatprep.subr.bf16.mxu0 0
        %947 = vmatpush1.bf16.xpose.msra.mxu0 0
        %948 = vmatprep.subr.bf16.mxu0 0
        %949 = vmatpush1.bf16.xpose.msra.mxu0 0
        %950 = vmatprep.mubr.bf16.mxu0 0
        %951 = vmatmul.mubr.bf16.gmra.mrb[0].mxu0 %v913
        %v952 = vpop.f32.mrb[0].mxu0
        %v953 = vadd.f32 0.0, %v952
        %v954 = vpop.f32.mrb[0].mxu0
        %v955 = vpop.f32.mrb[0].mxu0
        %v956 = vpop.f32.mrb[0].mxu0
        %957 = vdwg.mxu0
        %959 = vrot.lane.b32.xlu0 %v906, 96
        %v960 = vpop.permute.xlu0 %959
        %v962 = vsel %vm299, %v906, 0
        %v965 = vsel %vm299, %v960, 0
        %967 = vmatprep.subr.bf16.mxu0 0
        %968 = vmatpush1.bf16.xpose.msra.mxu0 %v965
        %969 = vmatprep.subr.bf16.mxu0 0
        %970 = vmatpush1.bf16.xpose.msra.mxu0 0
        %971 = vmatprep.subr.bf16.mxu0 0
        %972 = vmatpush1.bf16.xpose.msra.mxu0 0
        %973 = vmatprep.subr.bf16.mxu0 0
        %974 = vmatpush1.bf16.xpose.msra.mxu0 0
        %975 = vmatprep.subr.bf16.mxu0 0
        %976 = vmatpush1.bf16.xpose.msra.mxu0 0
        %977 = vmatprep.subr.bf16.mxu0 0
        %978 = vmatpush1.bf16.xpose.msra.mxu0 0
        %979 = vmatprep.subr.bf16.mxu0 0
        %980 = vmatpush1.bf16.xpose.msra.mxu0 0
        %981 = vmatprep.subr.bf16.mxu0 0
        %982 = vmatpush1.bf16.xpose.msra.mxu0 0
        %983 = vmatprep.subr.bf16.mxu0 0
        %984 = vmatpush1.bf16.xpose.msra.mxu0 0
        %985 = vmatprep.subr.bf16.mxu0 0
        %986 = vmatpush1.bf16.xpose.msra.mxu0 0
        %987 = vmatprep.subr.bf16.mxu0 0
        %988 = vmatpush1.bf16.xpose.msra.mxu0 0
        %989 = vmatprep.subr.bf16.mxu0 0
        %990 = vmatpush1.bf16.xpose.msra.mxu0 0
        %991 = vmatprep.subr.bf16.mxu0 0
        %992 = vmatpush1.bf16.xpose.msra.mxu0 0
        %993 = vmatprep.subr.bf16.mxu0 0
        %994 = vmatpush1.bf16.xpose.msra.mxu0 0
        %995 = vmatprep.subr.bf16.mxu0 0
        %996 = vmatpush1.bf16.xpose.msra.mxu0 0
        %997 = vmatprep.subr.bf16.mxu0 0
        %998 = vmatpush1.bf16.xpose.msra.mxu0 0
        %999 = vmatprep.mubr.bf16.mxu0 0
        %1000 = vmatmul.mubr.bf16.gmra.mrb[0].mxu0 %v962
        %v1001 = vpop.f32.mrb[0].mxu0
        %v1002 = vadd.f32 0.0, %v1001
        %v1003 = vpop.f32.mrb[0].mxu0
        %v1004 = vpop.f32.mrb[0].mxu0
        %v1005 = vpop.f32.mrb[0].mxu0
        %1006 = vdwg.mxu0
        %1008 = vrot.lane.b32.xlu0 %v907, 96
        %v1009 = vpop.permute.xlu0 %1008
        %v1011 = vsel %vm299, %v907, 0
        %v1014 = vsel %vm299, %v1009, 0
        %1016 = vmatprep.subr.bf16.mxu0 0
        %1017 = vmatpush1.bf16.xpose.msra.mxu0 %v1014
        %1018 = vmatprep.subr.bf16.mxu0 0
        %1019 = vmatpush1.bf16.xpose.msra.mxu0 0
        %1020 = vmatprep.subr.bf16.mxu0 0
        %1021 = vmatpush1.bf16.xpose.msra.mxu0 0
        %1022 = vmatprep.subr.bf16.mxu0 0
        %1023 = vmatpush1.bf16.xpose.msra.mxu0 0
        %1024 = vmatprep.subr.bf16.mxu0 0
        %1025 = vmatpush1.bf16.xpose.msra.mxu0 0
        %1026 = vmatprep.subr.bf16.mxu0 0
        %1027 = vmatpush1.bf16.xpose.msra.mxu0 0
        %1028 = vmatprep.subr.bf16.mxu0 0
        %1029 = vmatpush1.bf16.xpose.msra.mxu0 0
        %1030 = vmatprep.subr.bf16.mxu0 0
        %1031 = vmatpush1.bf16.xpose.msra.mxu0 0
        %1032 = vmatprep.subr.bf16.mxu0 0
        %1033 = vmatpush1.bf16.xpose.msra.mxu0 0
        %1034 = vmatprep.subr.bf16.mxu0 0
        %1035 = vmatpush1.bf16.xpose.msra.mxu0 0
        %1036 = vmatprep.subr.bf16.mxu0 0
        %1037 = vmatpush1.bf16.xpose.msra.mxu0 0
        %1038 = vmatprep.subr.bf16.mxu0 0
        %1039 = vmatpush1.bf16.xpose.msra.mxu0 0
        %1040 = vmatprep.subr.bf16.mxu0 0
        %1041 = vmatpush1.bf16.xpose.msra.mxu0 0
        %1042 = vmatprep.subr.bf16.mxu0 0
        %1043 = vmatpush1.bf16.xpose.msra.mxu0 0
        %1044 = vmatprep.subr.bf16.mxu0 0
        %1045 = vmatpush1.bf16.xpose.msra.mxu0 0
        %1046 = vmatprep.subr.bf16.mxu0 0
        %1047 = vmatpush1.bf16.xpose.msra.mxu0 0
        %1048 = vmatprep.mubr.bf16.mxu0 0
        %1049 = vmatmul.mubr.bf16.gmra.mrb[0].mxu0 %v1011
        %v1050 = vpop.f32.mrb[0].mxu0
        %v1051 = vadd.f32 0.0, %v1050
        %v1052 = vpop.f32.mrb[0].mxu0
        %v1053 = vpop.f32.mrb[0].mxu0
        %v1054 = vpop.f32.mrb[0].mxu0
        %1055 = vdwg.mxu0
        %1057 = vrot.lane.b32.xlu0 %v908, 96
        %v1058 = vpop.permute.xlu0 %1057
        %v1060 = vsel %vm299, %v908, 0
        %v1063 = vsel %vm299, %v1058, 0
        %1065 = vmatprep.subr.bf16.mxu0 0
        %1066 = vmatpush1.bf16.xpose.msra.mxu0 %v1063
        %1067 = vmatprep.subr.bf16.mxu0 0
        %1068 = vmatpush1.bf16.xpose.msra.mxu0 0
        %1069 = vmatprep.subr.bf16.mxu0 0
        %1070 = vmatpush1.bf16.xpose.msra.mxu0 0
        %1071 = vmatprep.subr.bf16.mxu0 0
        %1072 = vmatpush1.bf16.xpose.msra.mxu0 0
        %1073 = vmatprep.subr.bf16.mxu0 0
        %1074 = vmatpush1.bf16.xpose.msra.mxu0 0
        %1075 = vmatprep.subr.bf16.mxu0 0
        %1076 = vmatpush1.bf16.xpose.msra.mxu0 0
        %1077 = vmatprep.subr.bf16.mxu0 0
        %1078 = vmatpush1.bf16.xpose.msra.mxu0 0
        %1079 = vmatprep.subr.bf16.mxu0 0
        %1080 = vmatpush1.bf16.xpose.msra.mxu0 0
        %1081 = vmatprep.subr.bf16.mxu0 0
        %1082 = vmatpush1.bf16.xpose.msra.mxu0 0
        %1083 = vmatprep.subr.bf16.mxu0 0
        %1084 = vmatpush1.bf16.xpose.msra.mxu0 0
        %1085 = vmatprep.subr.bf16.mxu0 0
        %1086 = vmatpush1.bf16.xpose.msra.mxu0 0
        %1087 = vmatprep.subr.bf16.mxu0 0
        %1088 = vmatpush1.bf16.xpose.msra.mxu0 0
        %1089 = vmatprep.subr.bf16.mxu0 0
        %1090 = vmatpush1.bf16.xpose.msra.mxu0 0
        %1091 = vmatprep.subr.bf16.mxu0 0
        %1092 = vmatpush1.bf16.xpose.msra.mxu0 0
        %1093 = vmatprep.subr.bf16.mxu0 0
        %1094 = vmatpush1.bf16.xpose.msra.mxu0 0
        %1095 = vmatprep.subr.bf16.mxu0 0
        %1096 = vmatpush1.bf16.xpose.msra.mxu0 0
        %1097 = vmatprep.mubr.bf16.mxu0 0
        %1098 = vmatmul.mubr.bf16.gmra.mrb[0].mxu0 %v1060
        %v1099 = vpop.f32.mrb[0].mxu0
        %v1100 = vadd.f32 0.0, %v1099
        %v1101 = vpop.f32.mrb[0].mxu0
        %v1102 = vpop.f32.mrb[0].mxu0
        %v1103 = vpop.f32.mrb[0].mxu0
        %1104 = vdwg.mxu0
        %v1105 = vsel %vm299, %v953, -inf
        %1106 = vmax.xlane.f32.xlu0 %v1105
        %v1107 = vpop.xlane.xlu0 %1106
        %v1108 = vsel %vm299, %v1002, -inf
        %1109 = vmax.xlane.f32.xlu0 %v1108
        %v1110 = vpop.xlane.xlu0 %1109
        %v1111 = vsel %vm299, %v1051, -inf
        %1112 = vmax.xlane.f32.xlu0 %v1111
        %v1113 = vpop.xlane.xlu0 %1112
        %v1114 = vsel %vm299, %v1100, -inf
        %1115 = vmax.xlane.f32.xlu0 %v1114
        %v1116 = vpop.xlane.xlu0 %1115
        %v1117 = vsub.f32 %v953, %v1107
        %v1118 = vsub.f32 %v1002, %v1110
        %v1119 = vsub.f32 %v1051, %v1113
        %v1120 = vsub.f32 %v1100, %v1116
        %v1121 = vmul.f32 %v1117, 1.442695
        %v1122 = vpow.pop %v1121
        %v1123 = vmul.f32 %v1118, 1.442695
        %v1124 = vpow.pop %v1123
        %v1125 = vmul.f32 %v1119, 1.442695
        %v1126 = vpow.pop %v1125
        %v1127 = vmul.f32 %v1120, 1.442695
        %v1128 = vpow.pop %v1127
        %v1129 = vsel %vm299, %v1122, 0.0
        %1130 = vadd.xlane.f32.xlu0 %v1129
        %v1131 = vpop.xlane.xlu0 %1130
        %v1132 = vsel %vm299, %v1124, 0.0
        %1133 = vadd.xlane.f32.xlu0 %v1132
        %v1134 = vpop.xlane.xlu0 %1133
        %v1135 = vsel %vm299, %v1126, 0.0
        %1136 = vadd.xlane.f32.xlu0 %v1135
        %v1137 = vpop.xlane.xlu0 %1136
        %v1138 = vsel %vm299, %v1128, 0.0
        %1139 = vadd.xlane.f32.xlu0 %v1138
        %v1140 = vpop.xlane.xlu0 %1139
        %v1141 = vrcp.pop %v1131
        %v1142 = vmul.f32 %v1122, %v1141
        %v1143 = vrcp.pop %v1134
        %v1144 = vmul.f32 %v1124, %v1143
        %v1145 = vrcp.pop %v1137
        %v1146 = vmul.f32 %v1126, %v1145
        %v1147 = vrcp.pop %v1140
        %v1148 = vmul.f32 %v1128, %v1147
        %v1149 = vpack.c.bf16 %v1142, %v1142
        %v1150 = vpack.c.bf16 %v1144, %v1144
        %v1151 = vpack.c.bf16 %v1146, %v1146
        %v1152 = vpack.c.bf16 %v1148, %v1148
        %1153 = vrot.lane.b32.xlu0 %v905, 64
        %v1154 = vpop.permute.xlu0 %1153
        %v1156 = vsel %vm299, %v1149, 0
        %v1159 = vsel %vm546, %v1154, 0
        %1161 = vmatprep.subr.bf16.mxu0 0
        %1162 = vmatpush1.bf16.msra.mxu0 %v1159
        %1163 = vmatprep.subr.bf16.mxu0 0
        %1164 = vmatpush1.bf16.msra.mxu0 0
        %1165 = vmatprep.subr.bf16.mxu0 0
        %1166 = vmatpush1.bf16.msra.mxu0 0
        %1167 = vmatprep.subr.bf16.mxu0 0
        %1168 = vmatpush1.bf16.msra.mxu0 0
        %1169 = vmatprep.subr.bf16.mxu0 0
        %1170 = vmatpush1.bf16.msra.mxu0 0
        %1171 = vmatprep.subr.bf16.mxu0 0
        %1172 = vmatpush1.bf16.msra.mxu0 0
        %1173 = vmatprep.subr.bf16.mxu0 0
        %1174 = vmatpush1.bf16.msra.mxu0 0
        %1175 = vmatprep.subr.bf16.mxu0 0
        %1176 = vmatpush1.bf16.msra.mxu0 0
        %1177 = vmatprep.subr.bf16.mxu0 0
        %1178 = vmatpush1.bf16.msra.mxu0 0
        %1179 = vmatprep.subr.bf16.mxu0 0
        %1180 = vmatpush1.bf16.msra.mxu0 0
        %1181 = vmatprep.subr.bf16.mxu0 0
        %1182 = vmatpush1.bf16.msra.mxu0 0
        %1183 = vmatprep.subr.bf16.mxu0 0
        %1184 = vmatpush1.bf16.msra.mxu0 0
        %1185 = vmatprep.subr.bf16.mxu0 0
        %1186 = vmatpush1.bf16.msra.mxu0 0
        %1187 = vmatprep.subr.bf16.mxu0 0
        %1188 = vmatpush1.bf16.msra.mxu0 0
        %1189 = vmatprep.subr.bf16.mxu0 0
        %1190 = vmatpush1.bf16.msra.mxu0 0
        %1191 = vmatprep.subr.bf16.mxu0 0
        %1192 = vmatpush1.bf16.msra.mxu0 0
        %1193 = vmatprep.mubr.bf16.mxu0 0
        %1194 = vmatmul.mubr.bf16.gmra.mrb[0].mxu0 %v1156
        %v1195 = vpop.f32.mrb[0].mxu0
        %v1196 = vadd.f32 0.0, %v1195
        %v1197 = vpop.f32.mrb[0].mxu0
        %v1198 = vpop.f32.mrb[0].mxu0
        %v1199 = vpop.f32.mrb[0].mxu0
        %1200 = vdwg.mxu0
        %1201 = vrot.lane.b32.xlu0 %v906, 64
        %v1202 = vpop.permute.xlu0 %1201
        %v1204 = vsel %vm299, %v1150, 0
        %v1207 = vsel %vm546, %v1202, 0
        %1209 = vmatprep.subr.bf16.mxu0 0
        %1210 = vmatpush1.bf16.msra.mxu0 %v1207
        %1211 = vmatprep.subr.bf16.mxu0 0
        %1212 = vmatpush1.bf16.msra.mxu0 0
        %1213 = vmatprep.subr.bf16.mxu0 0
        %1214 = vmatpush1.bf16.msra.mxu0 0
        %1215 = vmatprep.subr.bf16.mxu0 0
        %1216 = vmatpush1.bf16.msra.mxu0 0
        %1217 = vmatprep.subr.bf16.mxu0 0
        %1218 = vmatpush1.bf16.msra.mxu0 0
        %1219 = vmatprep.subr.bf16.mxu0 0
        %1220 = vmatpush1.bf16.msra.mxu0 0
        %1221 = vmatprep.subr.bf16.mxu0 0
        %1222 = vmatpush1.bf16.msra.mxu0 0
        %1223 = vmatprep.subr.bf16.mxu0 0
        %1224 = vmatpush1.bf16.msra.mxu0 0
        %1225 = vmatprep.subr.bf16.mxu0 0
        %1226 = vmatpush1.bf16.msra.mxu0 0
        %1227 = vmatprep.subr.bf16.mxu0 0
        %1228 = vmatpush1.bf16.msra.mxu0 0
        %1229 = vmatprep.subr.bf16.mxu0 0
        %1230 = vmatpush1.bf16.msra.mxu0 0
        %1231 = vmatprep.subr.bf16.mxu0 0
        %1232 = vmatpush1.bf16.msra.mxu0 0
        %1233 = vmatprep.subr.bf16.mxu0 0
        %1234 = vmatpush1.bf16.msra.mxu0 0
        %1235 = vmatprep.subr.bf16.mxu0 0
        %1236 = vmatpush1.bf16.msra.mxu0 0
        %1237 = vmatprep.subr.bf16.mxu0 0
        %1238 = vmatpush1.bf16.msra.mxu0 0
        %1239 = vmatprep.subr.bf16.mxu0 0
        %1240 = vmatpush1.bf16.msra.mxu0 0
        %1241 = vmatprep.mubr.bf16.mxu0 0
        %1242 = vmatmul.mubr.bf16.gmra.mrb[0].mxu0 %v1204
        %v1243 = vpop.f32.mrb[0].mxu0
        %v1244 = vadd.f32 0.0, %v1243
        %v1245 = vpop.f32.mrb[0].mxu0
        %v1246 = vpop.f32.mrb[0].mxu0
        %v1247 = vpop.f32.mrb[0].mxu0
        %1248 = vdwg.mxu0
        %1249 = vrot.lane.b32.xlu0 %v907, 64
        %v1250 = vpop.permute.xlu0 %1249
        %v1252 = vsel %vm299, %v1151, 0
        %v1255 = vsel %vm546, %v1250, 0
        %1257 = vmatprep.subr.bf16.mxu0 0
        %1258 = vmatpush1.bf16.msra.mxu0 %v1255
        %1259 = vmatprep.subr.bf16.mxu0 0
        %1260 = vmatpush1.bf16.msra.mxu0 0
        %1261 = vmatprep.subr.bf16.mxu0 0
        %1262 = vmatpush1.bf16.msra.mxu0 0
        %1263 = vmatprep.subr.bf16.mxu0 0
        %1264 = vmatpush1.bf16.msra.mxu0 0
        %1265 = vmatprep.subr.bf16.mxu0 0
        %1266 = vmatpush1.bf16.msra.mxu0 0
        %1267 = vmatprep.subr.bf16.mxu0 0
        %1268 = vmatpush1.bf16.msra.mxu0 0
        %1269 = vmatprep.subr.bf16.mxu0 0
        %1270 = vmatpush1.bf16.msra.mxu0 0
        %1271 = vmatprep.subr.bf16.mxu0 0
        %1272 = vmatpush1.bf16.msra.mxu0 0
        %1273 = vmatprep.subr.bf16.mxu0 0
        %1274 = vmatpush1.bf16.msra.mxu0 0
        %1275 = vmatprep.subr.bf16.mxu0 0
        %1276 = vmatpush1.bf16.msra.mxu0 0
        %1277 = vmatprep.subr.bf16.mxu0 0
        %1278 = vmatpush1.bf16.msra.mxu0 0
        %1279 = vmatprep.subr.bf16.mxu0 0
        %1280 = vmatpush1.bf16.msra.mxu0 0
        %1281 = vmatprep.subr.bf16.mxu0 0
        %1282 = vmatpush1.bf16.msra.mxu0 0
        %1283 = vmatprep.subr.bf16.mxu0 0
        %1284 = vmatpush1.bf16.msra.mxu0 0
        %1285 = vmatprep.subr.bf16.mxu0 0
        %1286 = vmatpush1.bf16.msra.mxu0 0
        %1287 = vmatprep.subr.bf16.mxu0 0
        %1288 = vmatpush1.bf16.msra.mxu0 0
        %1289 = vmatprep.mubr.bf16.mxu0 0
        %1290 = vmatmul.mubr.bf16.gmra.mrb[0].mxu0 %v1252
        %v1291 = vpop.f32.mrb[0].mxu0
        %v1292 = vadd.f32 0.0, %v1291
        %v1293 = vpop.f32.mrb[0].mxu0
        %v1294 = vpop.f32.mrb[0].mxu0
        %v1295 = vpop.f32.mrb[0].mxu0
        %1296 = vdwg.mxu0
        %1297 = vrot.lane.b32.xlu0 %v908, 64
        %v1298 = vpop.permute.xlu0 %1297
        %v1300 = vsel %vm299, %v1152, 0
        %v1303 = vsel %vm546, %v1298, 0
        %1305 = vmatprep.subr.bf16.mxu0 0
        %1306 = vmatpush1.bf16.msra.mxu0 %v1303
        %1307 = vmatprep.subr.bf16.mxu0 0
        %1308 = vmatpush1.bf16.msra.mxu0 0
        %1309 = vmatprep.subr.bf16.mxu0 0
        %1310 = vmatpush1.bf16.msra.mxu0 0
        %1311 = vmatprep.subr.bf16.mxu0 0
        %1312 = vmatpush1.bf16.msra.mxu0 0
        %1313 = vmatprep.subr.bf16.mxu0 0
        %1314 = vmatpush1.bf16.msra.mxu0 0
        %1315 = vmatprep.subr.bf16.mxu0 0
        %1316 = vmatpush1.bf16.msra.mxu0 0
        %1317 = vmatprep.subr.bf16.mxu0 0
        %1318 = vmatpush1.bf16.msra.mxu0 0
        %1319 = vmatprep.subr.bf16.mxu0 0
        %1320 = vmatpush1.bf16.msra.mxu0 0
        %1321 = vmatprep.subr.bf16.mxu0 0
        %1322 = vmatpush1.bf16.msra.mxu0 0
        %1323 = vmatprep.subr.bf16.mxu0 0
        %1324 = vmatpush1.bf16.msra.mxu0 0
        %1325 = vmatprep.subr.bf16.mxu0 0
        %1326 = vmatpush1.bf16.msra.mxu0 0
        %1327 = vmatprep.subr.bf16.mxu0 0
        %1328 = vmatpush1.bf16.msra.mxu0 0
        %1329 = vmatprep.subr.bf16.mxu0 0
        %1330 = vmatpush1.bf16.msra.mxu0 0
        %1331 = vmatprep.subr.bf16.mxu0 0
        %1332 = vmatpush1.bf16.msra.mxu0 0
        %1333 = vmatprep.subr.bf16.mxu0 0
        %1334 = vmatpush1.bf16.msra.mxu0 0
        %1335 = vmatprep.subr.bf16.mxu0 0
        %1336 = vmatpush1.bf16.msra.mxu0 0
        %1337 = vmatprep.mubr.bf16.mxu0 0
        %1338 = vmatmul.mubr.bf16.gmra.mrb[0].mxu0 %v1300
        %v1339 = vpop.f32.mrb[0].mxu0
        %v1340 = vadd.f32 0.0, %v1339
        %v1341 = vpop.f32.mrb[0].mxu0
        %v1342 = vpop.f32.mrb[0].mxu0
        %v1343 = vpop.f32.mrb[0].mxu0
        %1344 = vdwg.mxu0
        %1346 = vrot.lane.b32.xlu0 %v1244, 8
        %v1347 = vpop.permute.xlu0 %1346
        %1350 = vrot.lane.b32.xlu0 %v1292, 16
        %v1351 = vpop.permute.xlu0 %1350
        %1354 = vrot.lane.b32.xlu0 %v1340, 24
        %v1355 = vpop.permute.xlu0 %1354
        %v1357 = vsel %vm299, %v1196, %v1347
        %v1358 = vsel %vm747, %v1357, %v1351
        %v1359 = vsel %vm749, %v1358, %v1355
        %v1360 = vadd.f32 %v890, %v1359
        %v1361 = vsel %vm752, %v1360, 1.0
        %v1362 = vpack.c.bf16 %v1361, %v1361
        %v1368 = vunpack.c.l.b16 %v827
        %v1369 = vunpack.c.l.b16 %v828
        %v1370 = vunpack.c.l.b16 %v829
        %v1371 = vunpack.c.l.b16 %v830
        %v1372 = vunpack.c.l.b16 %v831
        %v1373 = vpack.c.b16 %v1369, %v1368
        %v1374 = vpack.c.b16 %v1371, %v1370
        %v1375 = vpack.c.b16 %v1372, %v1372
        %v1379 = vsel %vm770, %v1362, 0
        %v1382 = vand.u32 %v1375, %v776
        %1384 = vmatprep.subr.bf16.mxu0 0
        %1385 = vmatpush1.bf16.msra.mxu0 %v1373
        %1386 = vmatprep.subr.bf16.mxu0 0
        %1387 = vmatpush1.bf16.msra.mxu0 %v1374
        %1388 = vmatprep.subr.bf16.mxu0 0
        %1389 = vmatpush1.bf16.msra.mxu0 %v1382
        %1390 = vmatprep.subr.bf16.mxu0 0
        %1391 = vmatpush1.bf16.msra.mxu0 0
        %1392 = vmatprep.subr.bf16.mxu0 0
        %1393 = vmatpush1.bf16.msra.mxu0 0
        %1394 = vmatprep.subr.bf16.mxu0 0
        %1395 = vmatpush1.bf16.msra.mxu0 0
        %1396 = vmatprep.subr.bf16.mxu0 0
        %1397 = vmatpush1.bf16.msra.mxu0 0
        %1398 = vmatprep.subr.bf16.mxu0 0
        %1399 = vmatpush1.bf16.msra.mxu0 0
        %1400 = vmatprep.subr.bf16.mxu0 0
        %1401 = vmatpush1.bf16.msra.mxu0 0
        %1402 = vmatprep.subr.bf16.mxu0 0
        %1403 = vmatpush1.bf16.msra.mxu0 0
        %1404 = vmatprep.subr.bf16.mxu0 0
        %1405 = vmatpush1.bf16.msra.mxu0 0
        %1406 = vmatprep.subr.bf16.mxu0 0
        %1407 = vmatpush1.bf16.msra.mxu0 0
        %1408 = vmatprep.subr.bf16.mxu0 0
        %1409 = vmatpush1.bf16.msra.mxu0 0
        %1410 = vmatprep.subr.bf16.mxu0 0
        %1411 = vmatpush1.bf16.msra.mxu0 0
        %1412 = vmatprep.subr.bf16.mxu0 0
        %1413 = vmatpush1.bf16.msra.mxu0 0
        %1414 = vmatprep.subr.bf16.mxu0 0
        %1415 = vmatpush1.bf16.msra.mxu0 0
        %1416 = vmatprep.mubr.bf16.mxu0 0
        %1417 = vmatmul.mubr.bf16.gmra.mrb[0].mxu0 %v1379
        %v1418 = vpop.f32.mrb[0].mxu0
        %v1419 = vadd.f32 0.0, %v1418
        %v1420 = vpop.f32.mrb[0].mxu0
        %v1421 = vpop.f32.mrb[0].mxu0
        %v1422 = vpop.f32.mrb[0].mxu0
        %1423 = vdwg.mxu0
        %v1424 = vmax.f32 %v1419, 0.0
        %v1425 = vadd.f32 %v1360, %v1424
        %1426 = vst.msk [vmem:[%s215] sm:$0xff] %vm752, %v1425
        %s1427 = sand.u32 %s137, 1
        %s1428 = scalar_lea.sflag [#allocation3], %s1427
        %s1429 = sand.u32 %s137, 1
        %s1430 = smul.addr %s1429, 8
        %s1431 = scalar_lea.vmem [#allocation2], %s1430
        // Predicated region
        $region41: #{tpu_custom_call.1} parent=39 // pred_check
          %p1432 = pneg %p147
        $region42: #{tpu_custom_call.1} parent=39 // pred_check_branch
          %1434 = sbr.rel (%p1432) target = $region44
        $region43: #{tpu_custom_call.1} parent=39 // pred_region
          %s1436 = ssub.s32 128, 128
          %1437 = vsyncadd %s1428, %s1436
          %s1438 = smul.addr %s19, 128
          %s1439 = scalar_lea.hbm %s5, %s1438
          %s1441 = sshll.u32 %s1431, 4
          %s1442 = int_to_ptr.vmem [resolvable:$true] %s1441
          %1444 = dma.vmem_to_hbm [thread:$0]  %s1442, 128, %s1439, %s1428
        $region44: #{tpu_custom_call.1} parent=39 // pred_fallthru
          _
      $region40: #{tpu_custom_call.1} parent=5 // pred_fallthru
        _
      %p1445 = scmp.le.s32.totalorder 2, %s14
      // Predicated region
      $region45: #{tpu_custom_call.1} parent=5 // pred_check
        %p1446 = pneg %p1445
      $region46: #{tpu_custom_call.1} parent=5 // pred_check_branch
        %1448 = sbr.rel (%p1446) target = $region48
      $region47: #{tpu_custom_call.1} parent=5 // pred_region
        %s1449 = ssub.s32 %s14, 2
        // Predicated region
        $region49: #{tpu_custom_call.1} parent=47 // pred_check
          %p1450 = pneg %p153
        $region50: #{tpu_custom_call.1} parent=47 // pred_check_branch
          %1452 = sbr.rel (%p1450) target = $region52
        $region51: #{tpu_custom_call.1} parent=47 // pred_region
          %s1453 = sand.u32 %s138, 1
          %s1454 = scalar_lea.sflag [#allocation3], %s1453
          %s1455 = sand.u32 %s138, 1
          %s1456 = smul.addr %s1455, 8
          %s1457 = scalar_lea.vmem [#allocation2], %s1456
          %1458 = dma.done %s1454, 128
        $region52: #{tpu_custom_call.1} parent=47 // pred_fallthru
          _
      $region48: #{tpu_custom_call.1} parent=5 // pred_fallthru
        _
    $region6: #{tpu_custom_call.1} parent=1 // loop_footer
      %s18 = sadd.s32 1, %s14
    $region7: #{tpu_custom_call.1} parent=1 // loop_footer_branch
      %13 = sbr.rel target = $region3
    $region8: #{tpu_custom_call.1} parent=1 // loop_exit
      _
    %1459 = vsyncpa [#allocation3], 1
    %s1460 = scalar_lea.sflag [#allocation3], 1
    %1461 = vsyncpa %s1460, 1

</llo_original>
